<compile_context>
chip_gen: v5e
topology: v5e:2x2
jax: 0.10.0
libtpu: 0.0.40
codegen_flags: <defaults>
</compile_context>

<pallas_src>
import functools

import jax
import jax.numpy as jnp
import numpy as np
from jax.experimental import pallas as pl
from jax.experimental.pallas import tpu as pltpu


# ---------------------------------------------------------------------------
# Kernels
# ---------------------------------------------------------------------------
def _cheb_conv_kernel(lr_ref, li_ref, h_ref, wa_ref, wb_ref, b_ref, out_ref,
                      *, nk, c_out, apply_relu):
    """One ChebConv layer (+ optional complex ReLU) for a row tile of nodes.

    lr_ref, li_ref : (nk, tn, N)   real / imag Chebyshev laplacian stacks (row tile)
    h_ref          : (N, 2*c_in)   packed [real | imag] node features (resident)
    wa_ref, wb_ref : (nk, 2*c_in, 2*c_out)  complex-packed weights
    b_ref          : (1, 2*c_out)  packed bias [b | b]
    out_ref        : (tn, 2*c_out) packed [real | imag] output features
    """
    h = h_ref[...]                                     # (N, 2*c_in)
    acc = jnp.zeros(out_ref.shape, dtype=jnp.float32)  # (tn, 2*c_out)

    for i in range(nk):  # small static loop over Chebyshev orders (K+1 terms)
        u = jnp.dot(lr_ref[i], h, preferred_element_type=jnp.float32)  # [Lr@r | Lr@im]
        v = jnp.dot(li_ref[i], h, preferred_element_type=jnp.float32)  # [Li@r | Li@im]
        acc = acc + jnp.dot(u, wa_ref[i], preferred_element_type=jnp.float32)
        acc = acc + jnp.dot(v, wb_ref[i], preferred_element_type=jnp.float32)

    out = acc + b_ref[...]

    if apply_relu:
        # complex ReLU: mask comes from the real half and is applied to both
        # halves.  Broadcast real -> both halves with a tiny selector matmul
        # (avoids lane slicing / concatenation inside the kernel).
        two_c = out.shape[1]
        r_idx = jax.lax.broadcasted_iota(jnp.int32, (two_c, two_c), 0)
        c_idx = jax.lax.broadcasted_iota(jnp.int32, (two_c, two_c), 1)
        c_mod = jnp.where(c_idx >= c_out, c_idx - c_out, c_idx)
        sel = ((r_idx < c_out) & (c_mod == r_idx)).astype(jnp.float32)
        real_b = jnp.dot(out, sel, preferred_element_type=jnp.float32)
        out = out * (real_b >= 0.0).astype(out.dtype)

    out_ref[...] = out.astype(out_ref.dtype)


def _edge_head_kernel(h_ref, src_ref, dst_ref, wa_ref, wb_ref, b_ref, out_ref,
                      *, n_nodes):
    """Edge gather + linear + log_softmax for one tile of edges.

    h_ref          : (N, 2*c)       packed [real|imag] node features (resident)
    src_ref, dst_ref : (te, 1) int32 edge endpoints for this tile
    wa_ref, wb_ref : (2*c, L)       permuted src-/dst-row halves of the linear weight
    b_ref          : (1, L)
    out_ref        : (te, L)        log_softmax output
    """
    h = h_ref[...]                                                     # (N, 2c)
    ga = jnp.dot(h, wa_ref[...], preferred_element_type=jnp.float32)   # (N, L)
    gb = jnp.dot(h, wb_ref[...], preferred_element_type=jnp.float32)   # (N, L)

    te = src_ref.shape[0]
    col = jax.lax.broadcasted_iota(jnp.int32, (te, n_nodes), 1)        # (te, N)
    oh_s = (col == src_ref[...]).astype(jnp.float32)                   # one-hot gather
    oh_d = (col == dst_ref[...]).astype(jnp.float32)

    logits = (jnp.dot(oh_s, ga, preferred_element_type=jnp.float32)
              + jnp.dot(oh_d, gb, preferred_element_type=jnp.float32)
              + b_ref[...])
    m = jnp.max(logits, axis=1, keepdims=True)
    z = logits - m
    s = jnp.sum(jnp.exp(z), axis=1, keepdims=True)
    out_ref[...] = (z - jnp.log(s)).astype(out_ref.dtype)


# ---------------------------------------------------------------------------
# Pallas-call wrappers
# ---------------------------------------------------------------------------
def _cheb_conv_layer(l_real, l_imag, h, w, b, *, apply_relu, tn):
    """One ChebConv layer.  h: (N, 2*c_in) packed -> (N, 2*c_out) packed."""
    nk, N, _ = l_real.shape
    c_in, c_out = w.shape[1], w.shape[2]

    # Complex-packed weights so that  [Lr@r|Lr@i] @ WA + [Li@r|Li@i] @ WB = [r_out|i_out]
    #   WA = [[W, 0], [0, W]],   WB = [[0, W], [-W, 0]]
    wa = jnp.zeros((nk, 2 * c_in, 2 * c_out), jnp.float32)
    wa = wa.at[:, :c_in, :c_out].set(w).at[:, c_in:, c_out:].set(w)
    wb = jnp.zeros((nk, 2 * c_in, 2 * c_out), jnp.float32)
    wb = wb.at[:, :c_in, c_out:].set(w).at[:, c_in:, :c_out].set(-w)
    b2 = jnp.concatenate([b, b], axis=1)                       # (1, 2*c_out)

    grid_spec = pltpu.PrefetchScalarGridSpec(
        num_scalar_prefetch=0,
        grid=(N // tn,),
        in_specs=[
            pl.BlockSpec((nk, tn, N), lambda r: (0, r, 0)),           # L_real tile
            pl.BlockSpec((nk, tn, N), lambda r: (0, r, 0)),           # L_imag tile
            pl.BlockSpec((N, 2 * c_in), lambda r: (0, 0)),            # H (resident)
            pl.BlockSpec((nk, 2 * c_in, 2 * c_out), lambda r: (0, 0, 0)),  # WA
            pl.BlockSpec((nk, 2 * c_in, 2 * c_out), lambda r: (0, 0, 0)),  # WB
            pl.BlockSpec((1, 2 * c_out), lambda r: (0, 0)),           # bias
        ],
        out_specs=pl.BlockSpec((tn, 2 * c_out), lambda r: (r, 0)),
    )

    kern = functools.partial(_cheb_conv_kernel, nk=nk, c_out=c_out,
                             apply_relu=apply_relu)
    return pl.pallas_call(
        kern,
        out_shape=jax.ShapeDtypeStruct((N, 2 * c_out), jnp.float32),
        grid_spec=grid_spec,
        compiler_params=pltpu.CompilerParams(
            dimension_semantics=("parallel",),
            vmem_limit_bytes=32 * 1024 * 1024),
    )(l_real, l_imag, h, wa, wb, b2)


def _edge_head(h, lin_w, lin_b, index, *, te):
    """Edge gather + linear + log_softmax.  h: (N, 2*c) packed [real|imag].

    The node-row gather is done in-kernel with a one-hot MXU contraction
    against the resident feature matrix, so no XLA gather / feature padding
    is needed on the wrapper side.
    """
    N, two_c = h.shape
    c = two_c // 2
    label_dim = lin_w.shape[1]

    # Fold the [real_src | real_dst | imag_src | imag_dst] concat + column
    # permutation into the linear weight:  logits = H[src]@Wa + H[dst]@Wb + b
    wa = jnp.concatenate([lin_w[0:c], lin_w[2 * c:3 * c]], axis=0)      # src rows
    wb = jnp.concatenate([lin_w[c:2 * c], lin_w[3 * c:4 * c]], axis=0)  # dst rows

    E = index.shape[0]
    e_pad = pl.cdiv(E, te) * te
    idx = index.astype(jnp.int32)
    if e_pad != E:
        idx = jnp.pad(idx, ((0, e_pad - E), (0, 0)))   # pad edges point at node 0
    src = idx[:, 0:1]
    dst = idx[:, 1:2]

    # TODO(synk): for very large node counts the one-hot gather (te x N per
    # tile) should be replaced by per-row DMAs; for typical MagNet graph
    # sizes the MXU contraction is faster than an HBM gather round-trip.
    grid_spec = pltpu.PrefetchScalarGridSpec(
        num_scalar_prefetch=0,
        grid=(e_pad // te,),
        in_specs=[
            pl.BlockSpec((N, two_c), lambda e: (0, 0)),               # H (resident)
            pl.BlockSpec((te, 1), lambda e: (e, 0)),                  # src ids
            pl.BlockSpec((te, 1), lambda e: (e, 0)),                  # dst ids
            pl.BlockSpec((two_c, label_dim), lambda e: (0, 0)),       # Wa
            pl.BlockSpec((two_c, label_dim), lambda e: (0, 0)),       # Wb
            pl.BlockSpec((1, label_dim), lambda e: (0, 0)),           # bias
        ],
        out_specs=pl.BlockSpec((te, label_dim), lambda e: (e, 0)),
    )
    kern = functools.partial(_edge_head_kernel, n_nodes=N)
    out = pl.pallas_call(
        kern,
        out_shape=jax.ShapeDtypeStruct((e_pad, label_dim), jnp.float32),
        grid_spec=grid_spec,
        compiler_params=pltpu.CompilerParams(
            dimension_semantics=("parallel",),
            vmem_limit_bytes=32 * 1024 * 1024),
    )(h, src, dst, wa, wb, lin_b.reshape(1, label_dim))
    return out[:E]


@functools.partial(jax.jit, static_argnames=("activation", "tn", "te"))
def chebnet_edge_forward(l_real, l_imag, x_real, x_imag, conv_params,
                         lin_w, lin_b, index, *, activation=False,
                         tn=128, te=128):
    """ChebNet_Edge forward (eval mode).

    l_real, l_imag : (K+1, N, N) dense Chebyshev laplacian stacks
    x_real, x_imag : (N, in_c)
    conv_params    : tuple of (W (K+1, c_in, c_out), bias (1, c_out)) per layer
    lin_w, lin_b   : (4*num_filter, label_dim), (label_dim,)
    index          : (E, 2) int32 edge endpoints
    Returns log_softmax logits of shape (E, label_dim).
    """
    N = x_real.shape[0]
    tn = min(tn, N)
    assert N % tn == 0 and tn % 8 == 0, "row tile must divide N and be a multiple of 8"
    assert te % 8 == 0, "edge tile must be a multiple of 8"

    h = jnp.concatenate([x_real, x_imag], axis=1)     # packed [real | imag]
    for (w, b) in conv_params:
        h = _cheb_conv_layer(l_real, l_imag, h, w, b,
                             apply_relu=activation, tn=tn)
    # dropout: no-op (module default dropout=False / eval mode)
    return _edge_head(h, lin_w, lin_b, index, te=te)


# ---------------------------------------------------------------------------
# Pure-JAX reference mirroring the PyTorch module
# ---------------------------------------------------------------------------
def chebnet_edge_reference(l_real, l_imag, x_real, x_imag, conv_params,
                           lin_w, lin_b, index, activation=False):
    real, imag = x_real, x_imag
    for (w, b) in conv_params:
        r_acc = jnp.zeros((real.shape[0], w.shape[2]), jnp.float32)
        i_acc = jnp.zeros((real.shape[0], w.shape[2]), jnp.float32)
        for i in range(w.shape[0]):
            r_acc = r_acc + (l_real[i] @ real) @ w[i] - (l_imag[i] @ imag) @ w[i]
            i_acc = i_acc + (l_imag[i] @ real) @ w[i] + (l_real[i] @ imag) @ w[i]
        real, imag = r_acc + b, i_acc + b
        if activation:
            mask = (real >= 0).astype(real.dtype)
            real, imag = mask * real, mask * imag
    x = jnp.concatenate([real[index[:, 0]], real[index[:, 1]],
                         imag[index[:, 0]], imag[index[:, 1]]], axis=-1)
    logits = x @ lin_w + lin_b
    return jax.nn.log_softmax(logits, axis=1)


# ---------------------------------------------------------------------------
# Demo / self-test
# ---------------------------------------------------------------------------
if __name__ == "__main__":
    # Small shapes consistent with the module: N nodes, (K+1) laplacians,
    # in_c input channels, num_filter hidden channels, label_dim classes,
    # E query edges, layer=2 ChebConv layers.
    N, in_c, num_filter, K, label_dim, E = 128, 4, 4, 2, 2, 96
    nk = K + 1

    key = jax.random.PRNGKey(0)
    keys = jax.random.split(key, 9)

    # Dense, magnitude-normalized stand-ins for the (sparse) normalized laplacians.
    l_real = jax.random.normal(keys[0], (nk, N, N), jnp.float32) / N
    l_imag = jax.random.normal(keys[1], (nk, N, N), jnp.float32) / N
    x_real = jax.random.normal(keys[2], (N, in_c), jnp.float32)
    x_imag = jax.random.normal(keys[3], (N, in_c), jnp.float32)

    def uniform_init(k, fan, shape):
        bound = 1.0 / np.sqrt(fan)
        return jax.random.uniform(k, shape, jnp.float32, -bound, bound)

    # ChebConv weights: uniform(+-1/sqrt(out_c)); bias initialized to zeros.
    w1 = uniform_init(keys[4], num_filter, (nk, in_c, num_filter))
    b1 = jnp.zeros((1, num_filter), jnp.float32)
    w2 = uniform_init(keys[5], num_filter, (nk, num_filter, num_filter))
    b2 = jnp.zeros((1, num_filter), jnp.float32)
    conv_params = ((w1, b1), (w2, b2))

    # Final Linear(num_filter * 2 * 2 -> label_dim), stored as (in, out).
    lin_w = uniform_init(keys[6], 4 * num_filter, (4 * num_filter, label_dim))
    lin_b = uniform_init(keys[7], 4 * num_filter, (label_dim,))

    index = jax.random.randint(keys[8], (E, 2), 0, N, dtype=jnp.int32)

    for activation in (False, True):   # default module config, and with complex ReLU
        out = chebnet_edge_forward(l_real, l_imag, x_real, x_imag, conv_params,
                                   lin_w, lin_b, index,
                                   activation=activation, tn=64, te=32)
        jax.block_until_ready(out)
        ref = chebnet_edge_reference(l_real, l_imag, x_real, x_imag, conv_params,
                                     lin_w, lin_b, index, activation=activation)
        np.testing.assert_allclose(np.asarray(out), np.asarray(ref),
                                   rtol=1e-4, atol=1e-4)

    print("KERNEL_OK")
</pallas_src>

<mosaic_0001>
module attributes {stable_mosaic.version = 11 : i64} {
  func.func @_cheb_conv_kernel(%arg0: i32, %arg1: memref<3x64x128xf32, #tpu.memory_space<vmem>>, %arg2: memref<3x64x128xf32, #tpu.memory_space<vmem>>, %arg3: memref<128x8xf32, #tpu.memory_space<vmem>>, %arg4: memref<3x8x8xf32, #tpu.memory_space<vmem>>, %arg5: memref<3x8x8xf32, #tpu.memory_space<vmem>>, %arg6: memref<1x8xf32, #tpu.memory_space<vmem>>, %arg7: memref<64x8xf32, #tpu.memory_space<vmem>>) attributes {dimension_semantics = [#tpu.dimension_semantics<parallel>], iteration_bounds = array<i64: 2>, scalar_prefetch = 0 : i64, scratch_operands = 0 : i64, tpu.core_type = #tpu.core_type<tc>, window_params = [{transform_indices = @transform_0, window_bounds = array<i64: 3, 64, 128>}, {transform_indices = @transform_1, window_bounds = array<i64: 3, 64, 128>}, {pipeline_mode = #tpu.pipeline_mode<synchronous>, transform_indices = @transform_2, window_bounds = array<i64: 128, 8>}, {pipeline_mode = #tpu.pipeline_mode<synchronous>, transform_indices = @transform_3, window_bounds = array<i64: 3, 8, 8>}, {pipeline_mode = #tpu.pipeline_mode<synchronous>, transform_indices = @transform_4, window_bounds = array<i64: 3, 8, 8>}, {pipeline_mode = #tpu.pipeline_mode<synchronous>, transform_indices = @transform_5, window_bounds = array<i64: 1, 8>}, {transform_indices = @transform_6, window_bounds = array<i64: 64, 8>}]} {
    %c0 = arith.constant 0 : index
    %c0_0 = arith.constant 0 : index
    %0 = vector.load %arg3[%c0, %c0_0] : memref<128x8xf32, #tpu.memory_space<vmem>>, vector<128x8xf32>
    %cst = arith.constant 0.000000e+00 : f32
    %1 = vector.broadcast %cst : f32 to vector<64x8xf32>
    %c0_1 = arith.constant 0 : index
    %c0_2 = arith.constant 0 : index
    %c0_3 = arith.constant 0 : index
    %2 = vector.load %arg1[%c0_1, %c0_2, %c0_3] : memref<3x64x128xf32, #tpu.memory_space<vmem>>, vector<1x64x128xf32>
    %3 = vector.shape_cast %2 : vector<1x64x128xf32> to vector<64x128xf32>
    %cst_4 = arith.constant dense<0.000000e+00> : vector<64x8xf32>
    %4 = tpu.matmul %3, %0, %cst_4 {dimension_numbers = #tpu.dot_dimension_numbers<[1], [0], [0], [1], [0, 0, 1, 1], [], []>} : vector<64x128xf32>, vector<128x8xf32>, vector<64x8xf32> -> vector<64x8xf32>
    %c0_5 = arith.constant 0 : index
    %c0_6 = arith.constant 0 : index
    %c0_7 = arith.constant 0 : index
    %5 = vector.load %arg2[%c0_5, %c0_6, %c0_7] : memref<3x64x128xf32, #tpu.memory_space<vmem>>, vector<1x64x128xf32>
    %6 = vector.shape_cast %5 : vector<1x64x128xf32> to vector<64x128xf32>
    %cst_8 = arith.constant dense<0.000000e+00> : vector<64x8xf32>
    %7 = tpu.matmul %6, %0, %cst_8 {dimension_numbers = #tpu.dot_dimension_numbers<[1], [0], [0], [1], [0, 0, 1, 1], [], []>} : vector<64x128xf32>, vector<128x8xf32>, vector<64x8xf32> -> vector<64x8xf32>
    %c0_9 = arith.constant 0 : index
    %c0_10 = arith.constant 0 : index
    %c0_11 = arith.constant 0 : index
    %8 = vector.load %arg4[%c0_9, %c0_10, %c0_11] : memref<3x8x8xf32, #tpu.memory_space<vmem>>, vector<1x8x8xf32>
    %9 = vector.shape_cast %8 : vector<1x8x8xf32> to vector<8x8xf32>
    %cst_12 = arith.constant dense<0.000000e+00> : vector<64x8xf32>
    %10 = tpu.matmul %4, %9, %cst_12 {dimension_numbers = #tpu.dot_dimension_numbers<[1], [0], [0], [1], [0, 0, 1, 1], [], []>} : vector<64x8xf32>, vector<8x8xf32>, vector<64x8xf32> -> vector<64x8xf32>
    %11 = arith.addf %1, %10 : vector<64x8xf32>
    %c0_13 = arith.constant 0 : index
    %c0_14 = arith.constant 0 : index
    %c0_15 = arith.constant 0 : index
    %12 = vector.load %arg5[%c0_13, %c0_14, %c0_15] : memref<3x8x8xf32, #tpu.memory_space<vmem>>, vector<1x8x8xf32>
    %13 = vector.shape_cast %12 : vector<1x8x8xf32> to vector<8x8xf32>
    %cst_16 = arith.constant dense<0.000000e+00> : vector<64x8xf32>
    %14 = tpu.matmul %7, %13, %cst_16 {dimension_numbers = #tpu.dot_dimension_numbers<[1], [0], [0], [1], [0, 0, 1, 1], [], []>} : vector<64x8xf32>, vector<8x8xf32>, vector<64x8xf32> -> vector<64x8xf32>
    %15 = arith.addf %11, %14 : vector<64x8xf32>
    %c1 = arith.constant 1 : index
    %c0_17 = arith.constant 0 : index
    %c0_18 = arith.constant 0 : index
    %16 = vector.load %arg1[%c1, %c0_17, %c0_18] : memref<3x64x128xf32, #tpu.memory_space<vmem>>, vector<1x64x128xf32>
    %17 = vector.shape_cast %16 : vector<1x64x128xf32> to vector<64x128xf32>
    %cst_19 = arith.constant dense<0.000000e+00> : vector<64x8xf32>
    %18 = tpu.matmul %17, %0, %cst_19 {dimension_numbers = #tpu.dot_dimension_numbers<[1], [0], [0], [1], [0, 0, 1, 1], [], []>} : vector<64x128xf32>, vector<128x8xf32>, vector<64x8xf32> -> vector<64x8xf32>
    %c1_20 = arith.constant 1 : index
    %c0_21 = arith.constant 0 : index
    %c0_22 = arith.constant 0 : index
    %19 = vector.load %arg2[%c1_20, %c0_21, %c0_22] : memref<3x64x128xf32, #tpu.memory_space<vmem>>, vector<1x64x128xf32>
    %20 = vector.shape_cast %19 : vector<1x64x128xf32> to vector<64x128xf32>
    %cst_23 = arith.constant dense<0.000000e+00> : vector<64x8xf32>
    %21 = tpu.matmul %20, %0, %cst_23 {dimension_numbers = #tpu.dot_dimension_numbers<[1], [0], [0], [1], [0, 0, 1, 1], [], []>} : vector<64x128xf32>, vector<128x8xf32>, vector<64x8xf32> -> vector<64x8xf32>
    %c1_24 = arith.constant 1 : index
    %c0_25 = arith.constant 0 : index
    %c0_26 = arith.constant 0 : index
    %22 = vector.load %arg4[%c1_24, %c0_25, %c0_26] : memref<3x8x8xf32, #tpu.memory_space<vmem>>, vector<1x8x8xf32>
    %23 = vector.shape_cast %22 : vector<1x8x8xf32> to vector<8x8xf32>
    %cst_27 = arith.constant dense<0.000000e+00> : vector<64x8xf32>
    %24 = tpu.matmul %18, %23, %cst_27 {dimension_numbers = #tpu.dot_dimension_numbers<[1], [0], [0], [1], [0, 0, 1, 1], [], []>} : vector<64x8xf32>, vector<8x8xf32>, vector<64x8xf32> -> vector<64x8xf32>
    %25 = arith.addf %15, %24 : vector<64x8xf32>
    %c1_28 = arith.constant 1 : index
    %c0_29 = arith.constant 0 : index
    %c0_30 = arith.constant 0 : index
    %26 = vector.load %arg5[%c1_28, %c0_29, %c0_30] : memref<3x8x8xf32, #tpu.memory_space<vmem>>, vector<1x8x8xf32>
    %27 = vector.shape_cast %26 : vector<1x8x8xf32> to vector<8x8xf32>
    %cst_31 = arith.constant dense<0.000000e+00> : vector<64x8xf32>
    %28 = tpu.matmul %21, %27, %cst_31 {dimension_numbers = #tpu.dot_dimension_numbers<[1], [0], [0], [1], [0, 0, 1, 1], [], []>} : vector<64x8xf32>, vector<8x8xf32>, vector<64x8xf32> -> vector<64x8xf32>
    %29 = arith.addf %25, %28 : vector<64x8xf32>
    %c2 = arith.constant 2 : index
    %c0_32 = arith.constant 0 : index
    %c0_33 = arith.constant 0 : index
    %30 = vector.load %arg1[%c2, %c0_32, %c0_33] : memref<3x64x128xf32, #tpu.memory_space<vmem>>, vector<1x64x128xf32>
    %31 = vector.shape_cast %30 : vector<1x64x128xf32> to vector<64x128xf32>
    %cst_34 = arith.constant dense<0.000000e+00> : vector<64x8xf32>
    %32 = tpu.matmul %31, %0, %cst_34 {dimension_numbers = #tpu.dot_dimension_numbers<[1], [0], [0], [1], [0, 0, 1, 1], [], []>} : vector<64x128xf32>, vector<128x8xf32>, vector<64x8xf32> -> vector<64x8xf32>
    %c2_35 = arith.constant 2 : index
    %c0_36 = arith.constant 0 : index
    %c0_37 = arith.constant 0 : index
    %33 = vector.load %arg2[%c2_35, %c0_36, %c0_37] : memref<3x64x128xf32, #tpu.memory_space<vmem>>, vector<1x64x128xf32>
    %34 = vector.shape_cast %33 : vector<1x64x128xf32> to vector<64x128xf32>
    %cst_38 = arith.constant dense<0.000000e+00> : vector<64x8xf32>
    %35 = tpu.matmul %34, %0, %cst_38 {dimension_numbers = #tpu.dot_dimension_numbers<[1], [0], [0], [1], [0, 0, 1, 1], [], []>} : vector<64x128xf32>, vector<128x8xf32>, vector<64x8xf32> -> vector<64x8xf32>
    %c2_39 = arith.constant 2 : index
    %c0_40 = arith.constant 0 : index
    %c0_41 = arith.constant 0 : index
    %36 = vector.load %arg4[%c2_39, %c0_40, %c0_41] : memref<3x8x8xf32, #tpu.memory_space<vmem>>, vector<1x8x8xf32>
    %37 = vector.shape_cast %36 : vector<1x8x8xf32> to vector<8x8xf32>
    %cst_42 = arith.constant dense<0.000000e+00> : vector<64x8xf32>
    %38 = tpu.matmul %32, %37, %cst_42 {dimension_numbers = #tpu.dot_dimension_numbers<[1], [0], [0], [1], [0, 0, 1, 1], [], []>} : vector<64x8xf32>, vector<8x8xf32>, vector<64x8xf32> -> vector<64x8xf32>
    %39 = arith.addf %29, %38 : vector<64x8xf32>
    %c2_43 = arith.constant 2 : index
    %c0_44 = arith.constant 0 : index
    %c0_45 = arith.constant 0 : index
    %40 = vector.load %arg5[%c2_43, %c0_44, %c0_45] : memref<3x8x8xf32, #tpu.memory_space<vmem>>, vector<1x8x8xf32>
    %41 = vector.shape_cast %40 : vector<1x8x8xf32> to vector<8x8xf32>
    %cst_46 = arith.constant dense<0.000000e+00> : vector<64x8xf32>
    %42 = tpu.matmul %35, %41, %cst_46 {dimension_numbers = #tpu.dot_dimension_numbers<[1], [0], [0], [1], [0, 0, 1, 1], [], []>} : vector<64x8xf32>, vector<8x8xf32>, vector<64x8xf32> -> vector<64x8xf32>
    %43 = arith.addf %39, %42 : vector<64x8xf32>
    %c0_47 = arith.constant 0 : index
    %c0_48 = arith.constant 0 : index
    %44 = vector.load %arg6[%c0_47, %c0_48] : memref<1x8xf32, #tpu.memory_space<vmem>>, vector<1x8xf32>
    %45 = vector.broadcast %44 : vector<1x8xf32> to vector<64x8xf32>
    %46 = arith.addf %43, %45 : vector<64x8xf32>
    %c0_49 = arith.constant 0 : index
    %c0_50 = arith.constant 0 : index
    %47 = vector.load %arg7[%c0_49, %c0_50] : memref<64x8xf32, #tpu.memory_space<vmem>>, vector<64x8xf32>
    tpu.vector_store %arg7[%c0_49, %c0_50], %46 {strides = array<i32>} : memref<64x8xf32, #tpu.memory_space<vmem>>, vector<64x8xf32>,
    return
  }
  func.func @transform_0(%arg0: i32) -> (i32, i32, i32) {
    %c0_i32 = arith.constant 0 : i32
    %c0_i32_0 = arith.constant 0 : i32
    %c0_i32_1 = arith.constant 0 : i32
    return %c0_i32, %arg0, %c0_i32_0 : i32, i32, i32
  }
  func.func @transform_1(%arg0: i32) -> (i32, i32, i32) {
    %c0_i32 = arith.constant 0 : i32
    %c0_i32_0 = arith.constant 0 : i32
    %c0_i32_1 = arith.constant 0 : i32
    return %c0_i32, %arg0, %c0_i32_0 : i32, i32, i32
  }
  func.func @transform_2(%arg0: i32) -> (i32, i32) {
    %c0_i32 = arith.constant 0 : i32
    %c0_i32_0 = arith.constant 0 : i32
    %c0_i32_1 = arith.constant 0 : i32
    return %c0_i32, %c0_i32_0 : i32, i32
  }
  func.func @transform_3(%arg0: i32) -> (i32, i32, i32) {
    %c0_i32 = arith.constant 0 : i32
    %c0_i32_0 = arith.constant 0 : i32
    %c0_i32_1 = arith.constant 0 : i32
    %c0_i32_2 = arith.constant 0 : i32
    return %c0_i32, %c0_i32_0, %c0_i32_1 : i32, i32, i32
  }
  func.func @transform_4(%arg0: i32) -> (i32, i32, i32) {
    %c0_i32 = arith.constant 0 : i32
    %c0_i32_0 = arith.constant 0 : i32
    %c0_i32_1 = arith.constant 0 : i32
    %c0_i32_2 = arith.constant 0 : i32
    return %c0_i32, %c0_i32_0, %c0_i32_1 : i32, i32, i32
  }
  func.func @transform_5(%arg0: i32) -> (i32, i32) {
    %c0_i32 = arith.constant 0 : i32
    %c0_i32_0 = arith.constant 0 : i32
    %c0_i32_1 = arith.constant 0 : i32
    return %c0_i32, %c0_i32_0 : i32, i32
  }
  func.func @transform_6(%arg0: i32) -> (i32, i32) {
    %c0_i32 = arith.constant 0 : i32
    %c0_i32_0 = arith.constant 0 : i32
    return %arg0, %c0_i32 : i32, i32
  }
}

module attributes {stable_mosaic.version = 11 : i64} {
  func.func @_edge_head_kernel(%arg0: i32, %arg1: memref<128x8xf32, #tpu.memory_space<vmem>>, %arg2: memref<32x1xi32, #tpu.memory_space<vmem>>, %arg3: memref<32x1xi32, #tpu.memory_space<vmem>>, %arg4: memref<8x2xf32, #tpu.memory_space<vmem>>, %arg5: memref<8x2xf32, #tpu.memory_space<vmem>>, %arg6: memref<1x2xf32, #tpu.memory_space<vmem>>, %arg7: memref<32x2xf32, #tpu.memory_space<vmem>>) attributes {dimension_semantics = [#tpu.dimension_semantics<parallel>], iteration_bounds = array<i64: 3>, scalar_prefetch = 0 : i64, scratch_operands = 0 : i64, tpu.core_type = #tpu.core_type<tc>, window_params = [{pipeline_mode = #tpu.pipeline_mode<synchronous>, transform_indices = @transform_0, window_bounds = array<i64: 128, 8>}, {transform_indices = @transform_1, window_bounds = array<i64: 32, 1>}, {transform_indices = @transform_2, window_bounds = array<i64: 32, 1>}, {pipeline_mode = #tpu.pipeline_mode<synchronous>, transform_indices = @transform_3, window_bounds = array<i64: 8, 2>}, {pipeline_mode = #tpu.pipeline_mode<synchronous>, transform_indices = @transform_4, window_bounds = array<i64: 8, 2>}, {pipeline_mode = #tpu.pipeline_mode<synchronous>, transform_indices = @transform_5, window_bounds = array<i64: 1, 2>}, {transform_indices = @transform_6, window_bounds = array<i64: 32, 2>}]} {
    %c0 = arith.constant 0 : index
    %c0_0 = arith.constant 0 : index
    %0 = vector.load %arg1[%c0, %c0_0] : memref<128x8xf32, #tpu.memory_space<vmem>>, vector<128x8xf32>
    %c0_1 = arith.constant 0 : index
    %c0_2 = arith.constant 0 : index
    %1 = vector.load %arg4[%c0_1, %c0_2] : memref<8x2xf32, #tpu.memory_space<vmem>>, vector<8x2xf32>
    %cst = arith.constant dense<0.000000e+00> : vector<128x2xf32>
    %2 = tpu.matmul %0, %1, %cst {dimension_numbers = #tpu.dot_dimension_numbers<[1], [0], [0], [1], [0, 0, 1, 1], [], []>} : vector<128x8xf32>, vector<8x2xf32>, vector<128x2xf32> -> vector<128x2xf32>
    %c0_3 = arith.constant 0 : index
    %c0_4 = arith.constant 0 : index
    %3 = vector.load %arg5[%c0_3, %c0_4] : memref<8x2xf32, #tpu.memory_space<vmem>>, vector<8x2xf32>
    %cst_5 = arith.constant dense<0.000000e+00> : vector<128x2xf32>
    %4 = tpu.matmul %0, %3, %cst_5 {dimension_numbers = #tpu.dot_dimension_numbers<[1], [0], [0], [1], [0, 0, 1, 1], [], []>} : vector<128x8xf32>, vector<8x2xf32>, vector<128x2xf32> -> vector<128x2xf32>
    %5 = tpu.iota {dimensions = array<i32: 1>} : vector<32x128xi32>
    %c0_6 = arith.constant 0 : index
    %c0_7 = arith.constant 0 : index
    %6 = vector.load %arg2[%c0_6, %c0_7] : memref<32x1xi32, #tpu.memory_space<vmem>>, vector<32x1xi32>
    %7 = vector.broadcast %6 : vector<32x1xi32> to vector<32x128xi32>
    %8 = arith.cmpi eq, %5, %7 : vector<32x128xi32>
    %9 = arith.extui %8 : vector<32x128xi1> to vector<32x128xi32>
    %10 = arith.sitofp %9 : vector<32x128xi32> to vector<32x128xf32>
    %c0_8 = arith.constant 0 : index
    %c0_9 = arith.constant 0 : index
    %11 = vector.load %arg3[%c0_8, %c0_9] : memref<32x1xi32, #tpu.memory_space<vmem>>, vector<32x1xi32>
    %12 = vector.broadcast %11 : vector<32x1xi32> to vector<32x128xi32>
    %13 = arith.cmpi eq, %5, %12 : vector<32x128xi32>
    %14 = arith.extui %13 : vector<32x128xi1> to vector<32x128xi32>
    %15 = arith.sitofp %14 : vector<32x128xi32> to vector<32x128xf32>
    %cst_10 = arith.constant dense<0.000000e+00> : vector<32x2xf32>
    %16 = tpu.matmul %10, %2, %cst_10 {dimension_numbers = #tpu.dot_dimension_numbers<[1], [0], [0], [1], [0, 0, 1, 1], [], []>} : vector<32x128xf32>, vector<128x2xf32>, vector<32x2xf32> -> vector<32x2xf32>
    %cst_11 = arith.constant dense<0.000000e+00> : vector<32x2xf32>
    %17 = tpu.matmul %15, %4, %cst_11 {dimension_numbers = #tpu.dot_dimension_numbers<[1], [0], [0], [1], [0, 0, 1, 1], [], []>} : vector<32x128xf32>, vector<128x2xf32>, vector<32x2xf32> -> vector<32x2xf32>
    %18 = arith.addf %16, %17 : vector<32x2xf32>
    %c0_12 = arith.constant 0 : index
    %c0_13 = arith.constant 0 : index
    %19 = vector.load %arg6[%c0_12, %c0_13] : memref<1x2xf32, #tpu.memory_space<vmem>>, vector<1x2xf32>
    %20 = vector.broadcast %19 : vector<1x2xf32> to vector<32x2xf32>
    %21 = arith.addf %18, %20 : vector<32x2xf32>
    %cst_14 = arith.constant dense<0xFF800000> : vector<32xf32>
    %22 = vector.multi_reduction <maximumf>, %21, %cst_14 [1] : vector<32x2xf32> to vector<32xf32>
    %23 = vector.shape_cast %22 : vector<32xf32> to vector<32x1xf32>
    %24 = vector.broadcast %23 : vector<32x1xf32> to vector<32x2xf32>
    %25 = arith.subf %21, %24 : vector<32x2xf32>
    %26 = math.exp %25 : vector<32x2xf32>
    %cst_15 = arith.constant dense<0.000000e+00> : vector<32xf32>
    %27 = vector.multi_reduction <add>, %26, %cst_15 [1] : vector<32x2xf32> to vector<32xf32>
    %28 = vector.shape_cast %27 : vector<32xf32> to vector<32x1xf32>
    %29 = math.log %28 : vector<32x1xf32>
    %30 = vector.broadcast %29 : vector<32x1xf32> to vector<32x2xf32>
    %31 = arith.subf %25, %30 : vector<32x2xf32>
    %c0_16 = arith.constant 0 : index
    %c0_17 = arith.constant 0 : index
    %32 = vector.load %arg7[%c0_16, %c0_17] : memref<32x2xf32, #tpu.memory_space<vmem>>, vector<32x2xf32>
    tpu.vector_store %arg7[%c0_16, %c0_17], %31 {strides = array<i32>} : memref<32x2xf32, #tpu.memory_space<vmem>>, vector<32x2xf32>,
    return
  }
  func.func @transform_0(%arg0: i32) -> (i32, i32) {
    %c0_i32 = arith.constant 0 : i32
    %c0_i32_0 = arith.constant 0 : i32
    %c0_i32_1 = arith.constant 0 : i32
    return %c0_i32, %c0_i32_0 : i32, i32
  }
  func.func @transform_1(%arg0: i32) -> (i32, i32) {
    %c0_i32 = arith.constant 0 : i32
    %c0_i32_0 = arith.constant 0 : i32
    return %arg0, %c0_i32 : i32, i32
  }
  func.func @transform_2(%arg0: i32) -> (i32, i32) {
    %c0_i32 = arith.constant 0 : i32
    %c0_i32_0 = arith.constant 0 : i32
    return %arg0, %c0_i32 : i32, i32
  }
  func.func @transform_3(%arg0: i32) -> (i32, i32) {
    %c0_i32 = arith.constant 0 : i32
    %c0_i32_0 = arith.constant 0 : i32
    %c0_i32_1 = arith.constant 0 : i32
    return %c0_i32, %c0_i32_0 : i32, i32
  }
  func.func @transform_4(%arg0: i32) -> (i32, i32) {
    %c0_i32 = arith.constant 0 : i32
    %c0_i32_0 = arith.constant 0 : i32
    %c0_i32_1 = arith.constant 0 : i32
    return %c0_i32, %c0_i32_0 : i32, i32
  }
  func.func @transform_5(%arg0: i32) -> (i32, i32) {
    %c0_i32 = arith.constant 0 : i32
    %c0_i32_0 = arith.constant 0 : i32
    %c0_i32_1 = arith.constant 0 : i32
    return %c0_i32, %c0_i32_0 : i32, i32
  }
  func.func @transform_6(%arg0: i32) -> (i32, i32) {
    %c0_i32 = arith.constant 0 : i32
    %c0_i32_0 = arith.constant 0 : i32
    return %arg0, %c0_i32 : i32, i32
  }
}

</mosaic_0001>

<llo_original>
// kernel: chebnet_edge_forward.3
$region0: #{chebnet_edge_forward.3}
  #allocation0 [shape = 'u32[]', space=smem, size = 0x4, offset = 0x4, fixed_abs, tag = 'smem constant byte address 0x4 - core index']
  #allocation1 [shape = 'u32[72,128]{1,0:T(1,128)}', space=vmem, size = 0x9000, scoped, tag = 'internal scratch']
  #allocation6 [shape = 's32[]', space=sflag, size = 0x4, offset = 0, fixed_abs, tag = 'sflag constant byte address 0x0 - dummy sync flag']
  #allocation8 [shape = 's32[]', space=sflag, size = 0x4, offset = 0, fixed_abs, tag = 'sflag constant byte address 0x0 - dummy sync flag']
  %s0 = inlined_call_operand.hbm [shape: f32[3,128,128], index: 0, kind: input, shape index: {}]
  %s1 = inlined_call_operand.hbm [shape: f32[3,128,128], index: 1, kind: input, shape index: {}]
  %s2 = inlined_call_operand.vmem [shape: f32[128,8], index: 2, kind: input, shape index: {}]
  %s3 = inlined_call_operand.vmem [shape: f32[3,8,8], index: 3, kind: input, shape index: {}]
  %s4 = inlined_call_operand.vmem [shape: f32[3,8,8], index: 4, kind: input, shape index: {}]
  %s5 = inlined_call_operand.vmem [shape: f32[1,8], index: 5, kind: input, shape index: {}]
  %s6 = inlined_call_operand.vmem [shape: f32[128,8], index: 6, kind: output, shape index: {}]
  %s7 = sld [smem:[#allocation0]]
  $region65: #{chebnet_edge_forward.3} parent=0
    _
  %s9 = ssub.s32 1, %s7
  %s10 = scalar_select 0, %s9, %s7
  $region1: #{chebnet_edge_forward.3} parent=0
    #allocation2 [shape = 'u8[196608]{0}', space=vmem, size = 0x30000, scoped, tag = 'input window, operand 0']
    #allocation3 [shape = 's32[2]{0}', space=sflag, size = 0x8, scoped, tag = 'scoped memory for chebnet_edge_forward.3']
    #allocation4 [shape = 'u8[196608]{0}', space=vmem, size = 0x30000, scoped, tag = 'input window, operand 1']
    #allocation5 [shape = 's32[2]{0}', space=sflag, size = 0x8, scoped, tag = 'scoped memory for chebnet_edge_forward.3']
    %11 = vsyncpa [#allocation3], 0
    %s12 = scalar_lea.sflag [#allocation3], 1
    %13 = vsyncpa %s12, 0
    %14 = vsyncpa [#allocation5], 0
    %s15 = scalar_lea.sflag [#allocation5], 1
    %16 = vsyncpa %s15, 0
    loop: start=0, step=1, limit=4
    $region2: #{chebnet_edge_forward.3} parent=1 // loop_pre_header
      _
    $region3: #{chebnet_edge_forward.3} parent=1 // loop_header
      %s18 = sphi 0, %s22
      %p19 = scmp.ge.s32.totalorder %s18, 4
      %s28 = sphi 0, %s30
      %s31 = sphi 0, %s28
      %s32 = sphi 0, %s31
      %s48 = sphi 0, %s32
      %s54 = sphi 0, %s56
      %s57 = sphi 0, %s54
      %s58 = sphi 0, %s57
      %s74 = sphi 0, %s58
      %s78 = sphi 0, %s78
      %s80 = sphi 0, %s78
      %s81 = sphi 0, %s80
      %s95 = sphi 0, %s81
      %s99 = sphi 0, %s99
      %s101 = sphi 0, %s99
      %s102 = sphi 0, %s101
      %s116 = sphi 0, %s102
      %s120 = sphi 0, %s120
      %s122 = sphi 0, %s120
      %s123 = sphi 0, %s122
      %s137 = sphi 0, %s123
      %s141 = sphi 0, %s141
      %s143 = sphi 0, %s141
      %s144 = sphi 0, %s143
      %s158 = sphi 0, %s144
      %s164 = sphi 0, %s166
      %s167 = sphi 0, %s164
      %s168 = sphi 0, %s167
      %s184 = sphi 0, %s168
    $region4: #{chebnet_edge_forward.3} parent=1 // loop_header_branch
      %21 = sbr.rel (%p19) target = $region8
    $region5: #{chebnet_edge_forward.3} parent=1 // loop_body
      %s23 = ssub.s32 %s18, 1
      %s24 = ssub.s32 %s18, 2
      %s25 = sadd.s32 %s18, 1
      %s26 = ssub.s32 %s18, %s25
      %p27 = scmp.eq.s32.totalorder %s26, 0
      %s29 = sadd.s32 %s28, 1
      %s30 = scalar_select %p27, %s28, %s29
      %p33 = pneg %p27
      %p34 = scmp.eq.s32.totalorder %s18, 1
      %p35 = por %p33, %p34
      %p36 = scmp.ne.s32.totalorder %s28, %s31
      %p37 = scmp.eq.s32.totalorder %s18, 0
      %p38 = por %p36, %p37
      %p39 = scmp.ne.s32.totalorder %s28, %s31
      %p40 = scmp.eq.s32.totalorder %s23, 1
      %p41 = por %p39, %p40
      %p42 = scmp.ne.s32.totalorder %s31, %s32
      %p43 = scmp.eq.s32.totalorder %s23, 0
      %p44 = por %p42, %p43
      %p45 = scmp.ne.s32.totalorder %s31, %s32
      %p46 = scmp.eq.s32.totalorder %s24, 1
      %p47 = por %p45, %p46
      %p49 = scmp.ne.s32.totalorder %s32, %s48
      %p50 = scmp.eq.s32.totalorder %s24, 0
      %p51 = por %p49, %p50
      %s52 = ssub.s32 %s18, %s25
      %p53 = scmp.eq.s32.totalorder %s52, 0
      %s55 = sadd.s32 %s54, 1
      %s56 = scalar_select %p53, %s54, %s55
      %p59 = pneg %p53
      %p60 = scmp.eq.s32.totalorder %s18, 1
      %p61 = por %p59, %p60
      %p62 = scmp.ne.s32.totalorder %s54, %s57
      %p63 = scmp.eq.s32.totalorder %s18, 0
      %p64 = por %p62, %p63
      %p65 = scmp.ne.s32.totalorder %s54, %s57
      %p66 = scmp.eq.s32.totalorder %s23, 1
      %p67 = por %p65, %p66
      %p68 = scmp.ne.s32.totalorder %s57, %s58
      %p69 = scmp.eq.s32.totalorder %s23, 0
      %p70 = por %p68, %p69
      %p71 = scmp.ne.s32.totalorder %s57, %s58
      %p72 = scmp.eq.s32.totalorder %s24, 1
      %p73 = por %p71, %p72
      %p75 = scmp.ne.s32.totalorder %s58, %s74
      %p76 = scmp.eq.s32.totalorder %s24, 0
      %p77 = por %p75, %p76
      %s79 = sadd.s32 %s78, 1
      %p82 = scmp.eq.s32.totalorder %s18, 1
      %p83 = scmp.ne.s32.totalorder %s78, %s80
      %p84 = scmp.eq.s32.totalorder %s18, 0
      %p85 = por %p83, %p84
      %p86 = scmp.ne.s32.totalorder %s78, %s80
      %p87 = scmp.eq.s32.totalorder %s23, 1
      %p88 = por %p86, %p87
      %p89 = scmp.ne.s32.totalorder %s80, %s81
      %p90 = scmp.eq.s32.totalorder %s23, 0
      %p91 = por %p89, %p90
      %p92 = scmp.ne.s32.totalorder %s80, %s81
      %p93 = scmp.eq.s32.totalorder %s24, 1
      %p94 = por %p92, %p93
      %p96 = scmp.ne.s32.totalorder %s81, %s95
      %p97 = scmp.eq.s32.totalorder %s24, 0
      %p98 = por %p96, %p97
      %s100 = sadd.s32 %s99, 1
      %p103 = scmp.eq.s32.totalorder %s18, 1
      %p104 = scmp.ne.s32.totalorder %s99, %s101
      %p105 = scmp.eq.s32.totalorder %s18, 0
      %p106 = por %p104, %p105
      %p107 = scmp.ne.s32.totalorder %s99, %s101
      %p108 = scmp.eq.s32.totalorder %s23, 1
      %p109 = por %p107, %p108
      %p110 = scmp.ne.s32.totalorder %s101, %s102
      %p111 = scmp.eq.s32.totalorder %s23, 0
      %p112 = por %p110, %p111
      %p113 = scmp.ne.s32.totalorder %s101, %s102
      %p114 = scmp.eq.s32.totalorder %s24, 1
      %p115 = por %p113, %p114
      %p117 = scmp.ne.s32.totalorder %s102, %s116
      %p118 = scmp.eq.s32.totalorder %s24, 0
      %p119 = por %p117, %p118
      %s121 = sadd.s32 %s120, 1
      %p124 = scmp.eq.s32.totalorder %s18, 1
      %p125 = scmp.ne.s32.totalorder %s120, %s122
      %p126 = scmp.eq.s32.totalorder %s18, 0
      %p127 = por %p125, %p126
      %p128 = scmp.ne.s32.totalorder %s120, %s122
      %p129 = scmp.eq.s32.totalorder %s23, 1
      %p130 = por %p128, %p129
      %p131 = scmp.ne.s32.totalorder %s122, %s123
      %p132 = scmp.eq.s32.totalorder %s23, 0
      %p133 = por %p131, %p132
      %p134 = scmp.ne.s32.totalorder %s122, %s123
      %p135 = scmp.eq.s32.totalorder %s24, 1
      %p136 = por %p134, %p135
      %p138 = scmp.ne.s32.totalorder %s123, %s137
      %p139 = scmp.eq.s32.totalorder %s24, 0
      %p140 = por %p138, %p139
      %s142 = sadd.s32 %s141, 1
      %p145 = scmp.eq.s32.totalorder %s18, 1
      %p146 = scmp.ne.s32.totalorder %s141, %s143
      %p147 = scmp.eq.s32.totalorder %s18, 0
      %p148 = por %p146, %p147
      %p149 = scmp.ne.s32.totalorder %s141, %s143
      %p150 = scmp.eq.s32.totalorder %s23, 1
      %p151 = por %p149, %p150
      %p152 = scmp.ne.s32.totalorder %s143, %s144
      %p153 = scmp.eq.s32.totalorder %s23, 0
      %p154 = por %p152, %p153
      %p155 = scmp.ne.s32.totalorder %s143, %s144
      %p156 = scmp.eq.s32.totalorder %s24, 1
      %p157 = por %p155, %p156
      %p159 = scmp.ne.s32.totalorder %s144, %s158
      %p160 = scmp.eq.s32.totalorder %s24, 0
      %p161 = por %p159, %p160
      %s162 = ssub.s32 %s18, %s25
      %p163 = scmp.eq.s32.totalorder %s162, 0
      %s165 = sadd.s32 %s164, 1
      %s166 = scalar_select %p163, %s164, %s165
      %p169 = pneg %p163
      %p170 = scmp.eq.s32.totalorder %s18, 1
      %p171 = por %p169, %p170
      %p172 = scmp.ne.s32.totalorder %s164, %s167
      %p173 = scmp.eq.s32.totalorder %s18, 0
      %p174 = por %p172, %p173
      %p175 = scmp.ne.s32.totalorder %s164, %s167
      %p176 = scmp.eq.s32.totalorder %s23, 1
      %p177 = por %p175, %p176
      %p178 = scmp.ne.s32.totalorder %s167, %s168
      %p179 = scmp.eq.s32.totalorder %s23, 0
      %p180 = por %p178, %p179
      %p181 = scmp.ne.s32.totalorder %s167, %s168
      %p182 = scmp.eq.s32.totalorder %s24, 1
      %p183 = por %p181, %p182
      %p185 = scmp.ne.s32.totalorder %s168, %s184
      %p186 = scmp.eq.s32.totalorder %s24, 0
      %p187 = por %p185, %p186
      %p188 = scmp.le.s32.totalorder 1, %s18
      %p189 = scmp.lt.s32.totalorder %s18, 3
      %p190 = pnand %p188, %p189
      %p191 = pneg %p190
      // Predicated region
      $region9: #{chebnet_edge_forward.3} parent=5 // pred_check
        _
      $region10: #{chebnet_edge_forward.3} parent=5 // pred_check_branch
        %193 = sbr.rel (%p190) target = $region12
      $region11: #{chebnet_edge_forward.3} parent=5 // pred_region
        %s194 = ssub.s32 %s18, 1
        // Predicated region
        $region13: #{chebnet_edge_forward.3} parent=11 // pred_check
          %p195 = pneg %p91
        $region14: #{chebnet_edge_forward.3} parent=11 // pred_check_branch
          %197 = sbr.rel (%p195) target = $region16
        $region15: #{chebnet_edge_forward.3} parent=11 // pred_region
          _
        $region16: #{chebnet_edge_forward.3} parent=11 // pred_fallthru
          _
        // Predicated region
        $region17: #{chebnet_edge_forward.3} parent=11 // pred_check
          %p198 = pneg %p112
        $region18: #{chebnet_edge_forward.3} parent=11 // pred_check_branch
          %200 = sbr.rel (%p198) target = $region20
        $region19: #{chebnet_edge_forward.3} parent=11 // pred_region
          _
        $region20: #{chebnet_edge_forward.3} parent=11 // pred_fallthru
          _
        // Predicated region
        $region21: #{chebnet_edge_forward.3} parent=11 // pred_check
          %p201 = pneg %p133
        $region22: #{chebnet_edge_forward.3} parent=11 // pred_check_branch
          %203 = sbr.rel (%p201) target = $region24
        $region23: #{chebnet_edge_forward.3} parent=11 // pred_region
          _
        $region24: #{chebnet_edge_forward.3} parent=11 // pred_fallthru
          _
        // Predicated region
        $region25: #{chebnet_edge_forward.3} parent=11 // pred_check
          %p204 = pneg %p154
        $region26: #{chebnet_edge_forward.3} parent=11 // pred_check_branch
          %206 = sbr.rel (%p204) target = $region28
        $region27: #{chebnet_edge_forward.3} parent=11 // pred_region
          _
        $region28: #{chebnet_edge_forward.3} parent=11 // pred_fallthru
          _
      $region12: #{chebnet_edge_forward.3} parent=5 // pred_fallthru
        _
      %p207 = scmp.lt.s32.totalorder %s18, 2
      // Predicated region
      $region29: #{chebnet_edge_forward.3} parent=5 // pred_check
        %p208 = pneg %p207
      $region30: #{chebnet_edge_forward.3} parent=5 // pred_check_branch
        %210 = sbr.rel (%p208) target = $region32
      $region31: #{chebnet_edge_forward.3} parent=5 // pred_region
        // Predicated region
        $region33: #{chebnet_edge_forward.3} parent=31 // pred_check
          %p211 = pneg %p38
        $region34: #{chebnet_edge_forward.3} parent=31 // pred_check_branch
          %213 = sbr.rel (%p211) target = $region36
        $region35: #{chebnet_edge_forward.3} parent=31 // pred_region
          #allocation7 [shape = 'u32[6]{0}', space=smem, size = 0x18, scoped, tag = 'DMA stride descriptor']
          %s214 = sand.u32 %s28, 1
          %s215 = scalar_lea.sflag [#allocation3], %s214
          %s216 = sand.u32 %s28, 1
          %s217 = smul.addr %s216, 192
          %s218 = scalar_lea.vmem [#allocation2], %s217
          %s219 = smul.u32 8, %s18
          %221 = vsyncadd %s215, 0
          %s222 = smul.addr %s219, 8
          %s223 = scalar_lea.hbm %s0, %s222
          %s225 = sshll.u32 1, 14
          %s226 = sxor.u32 4294967295, %s225
          %s228 = sld [smem:[#allocation0]]
          %s229 = sadd.s32 2, %s228
          %s231 = sshll.u32 7, 26
          %s232 = sxor.u32 4294967295, %s231
          %s233 = sand.u32 0, %s232
          %s234 = sshll.u32 %s229, 26
          %s235 = sor.u32 %s233, %s234
          %s236 = sshll.u32 %s223, 4
          %s237 = int_to_ptr.hbm [resolvable:$true] %s236
          %s238 = sshll.u32 %s218, 4
          %s239 = int_to_ptr.vmem [resolvable:$true] %s238
          %245 = sst [smem:[#allocation7]] 2048
          %s246 = scalar_lea.smem [#allocation7], 1
          %247 = sst [smem:[%s246]] 1024
          %s248 = scalar_lea.smem [#allocation7], 2
          %249 = sst [smem:[%s248]] 8
          %s250 = scalar_lea.smem [#allocation7], 3
          %251 = sst [smem:[%s250]] 128
          %s252 = scalar_lea.smem [#allocation7], 4
          %253 = sst [smem:[%s252]] 128
          %s254 = scalar_lea.smem [#allocation7], 5
          %255 = sst [smem:[%s254]] 8
          %257 = dma.general %s237, 3072, %s239, %s215, [#allocation6], [#allocation7], %s235, 0
        $region36: #{chebnet_edge_forward.3} parent=31 // pred_fallthru
          _
        // Predicated region
        $region37: #{chebnet_edge_forward.3} parent=31 // pred_check
          %p258 = pneg %p64
        $region38: #{chebnet_edge_forward.3} parent=31 // pred_check_branch
          %260 = sbr.rel (%p258) target = $region40
        $region39: #{chebnet_edge_forward.3} parent=31 // pred_region
          #allocation9 [shape = 'u32[6]{0}', space=smem, size = 0x18, scoped, tag = 'DMA stride descriptor']
          %s261 = sand.u32 %s54, 1
          %s262 = scalar_lea.sflag [#allocation5], %s261
          %s263 = sand.u32 %s54, 1
          %s264 = smul.addr %s263, 192
          %s265 = scalar_lea.vmem [#allocation4], %s264
          %s266 = smul.u32 8, %s18
          %268 = vsyncadd %s262, 0
          %s269 = smul.addr %s266, 8
          %s270 = scalar_lea.hbm %s1, %s269
          %s272 = sshll.u32 1, 14
          %s273 = sxor.u32 4294967295, %s272
          %s275 = sld [smem:[#allocation0]]
          %s276 = sadd.s32 2, %s275
          %s278 = sshll.u32 7, 26
          %s279 = sxor.u32 4294967295, %s278
          %s280 = sand.u32 0, %s279
          %s281 = sshll.u32 %s276, 26
          %s282 = sor.u32 %s280, %s281
          %s283 = sshll.u32 %s270, 4
          %s284 = int_to_ptr.hbm [resolvable:$true] %s283
          %s285 = sshll.u32 %s265, 4
          %s286 = int_to_ptr.vmem [resolvable:$true] %s285
          %292 = sst [smem:[#allocation9]] 2048
          %s293 = scalar_lea.smem [#allocation9], 1
          %294 = sst [smem:[%s293]] 1024
          %s295 = scalar_lea.smem [#allocation9], 2
          %296 = sst [smem:[%s295]] 8
          %s297 = scalar_lea.smem [#allocation9], 3
          %298 = sst [smem:[%s297]] 128
          %s299 = scalar_lea.smem [#allocation9], 4
          %300 = sst [smem:[%s299]] 128
          %s301 = scalar_lea.smem [#allocation9], 5
          %302 = sst [smem:[%s301]] 8
          %304 = dma.general %s284, 3072, %s286, %s262, [#allocation8], [#allocation9], %s282, 0
        $region40: #{chebnet_edge_forward.3} parent=31 // pred_fallthru
          _
      $region32: #{chebnet_edge_forward.3} parent=5 // pred_fallthru
        _
      %p305 = scmp.le.s32.totalorder 1, %s18
      %p306 = scmp.lt.s32.totalorder %s18, 3
      %p307 = pnand %p305, %p306
      %p308 = pneg %p307
      // Predicated region
      $region41: #{chebnet_edge_forward.3} parent=5 // pred_check
        _
      $region42: #{chebnet_edge_forward.3} parent=5 // pred_check_branch
        %310 = sbr.rel (%p307) target = $region44
      $region43: #{chebnet_edge_forward.3} parent=5 // pred_region
        %s311 = ssub.s32 %s18, 1
        %s312 = sand.u32 %s31, 1
        %s313 = scalar_lea.sflag [#allocation3], %s312
        %s314 = sand.u32 %s31, 1
        %s315 = smul.addr %s314, 192
        %s316 = scalar_lea.vmem [#allocation2], %s315
        // Predicated region
        $region45: #{chebnet_edge_forward.3} parent=43 // pred_check
          %p317 = pneg %p44
        $region46: #{chebnet_edge_forward.3} parent=43 // pred_check_branch
          %319 = sbr.rel (%p317) target = $region48
        $region47: #{chebnet_edge_forward.3} parent=43 // pred_region
          %321 = dma.done %s313, 3072
        $region48: #{chebnet_edge_forward.3} parent=43 // pred_fallthru
          _
        %s322 = sand.u32 %s57, 1
        %s323 = scalar_lea.sflag [#allocation5], %s322
        %s324 = sand.u32 %s57, 1
        %s325 = smul.addr %s324, 192
        %s326 = scalar_lea.vmem [#allocation4], %s325
        // Predicated region
        $region49: #{chebnet_edge_forward.3} parent=43 // pred_check
          %p327 = pneg %p70
        $region50: #{chebnet_edge_forward.3} parent=43 // pred_check_branch
          %329 = sbr.rel (%p327) target = $region52
        $region51: #{chebnet_edge_forward.3} parent=43 // pred_region
          %331 = dma.done %s323, 3072
        $region52: #{chebnet_edge_forward.3} parent=43 // pred_fallthru
          _
        %s332 = sand.u32 %s31, 1
        %s333 = scalar_lea.sflag [#allocation3], %s332
        %s334 = sand.u32 %s31, 1
        %s335 = smul.addr %s334, 192
        %s336 = scalar_lea.vmem [#allocation2], %s335
        %p337 = pneg %p44
        %p338 = pneg %p41
        %s339 = sand.u32 %s57, 1
        %s340 = scalar_lea.sflag [#allocation5], %s339
        %s341 = sand.u32 %s57, 1
        %s342 = smul.addr %s341, 192
        %s343 = scalar_lea.vmem [#allocation4], %s342
        %p344 = pneg %p70
        %p345 = pneg %p67
        %p346 = pneg %p91
        %p347 = pneg %p88
        %p348 = pneg %p112
        %p349 = pneg %p109
        %p350 = pneg %p133
        %p351 = pneg %p130
        %p352 = pneg %p154
        %p353 = pneg %p151
        %p354 = pneg %p180
        %p355 = pneg %p177
        %s356 = smul.u32 8, %s23
        %p357 = scmp.lt.s32.totalorder %s356, 15
        %s358 = scalar_select %p357, %s356, 15
        %s359 = smul.addr %s358, 8
        %s360 = scalar_lea.vmem %s6, %s359
        %s361 = smul.u32 8, %s23
        %s362 = smul.u32 8, %s23
        %s363 = smul.u32 8, %s23
        %p364 = scmp.lt.s32.totalorder %s363, 15
        %s365 = scalar_select %p364, %s363, 15
        %s366 = smul.addr %s365, 8
        %s367 = scalar_lea.vmem %s6, %s366
        %s368 = smul.u32 8, %s23
        %v369 = vld [vmem:[%s2] sm:$0xff]
        %v370 = vld [vmem:[%s2 + $0x8] sm:$0xff]
        %v371 = vld [vmem:[%s2 + $0x10] sm:$0xff]
        %v372 = vld [vmem:[%s2 + $0x18] sm:$0xff]
        %v373 = vld [vmem:[%s2 + $0x20] sm:$0xff]
        %v374 = vld [vmem:[%s2 + $0x28] sm:$0xff]
        %v375 = vld [vmem:[%s2 + $0x30] sm:$0xff]
        %v376 = vld [vmem:[%s2 + $0x38] sm:$0xff]
        %v377 = vld [vmem:[%s2 + $0x40] sm:$0xff]
        %v378 = vld [vmem:[%s2 + $0x48] sm:$0xff]
        %v379 = vld [vmem:[%s2 + $0x50] sm:$0xff]
        %v380 = vld [vmem:[%s2 + $0x58] sm:$0xff]
        %v381 = vld [vmem:[%s2 + $0x60] sm:$0xff]
        %v382 = vld [vmem:[%s2 + $0x68] sm:$0xff]
        %v383 = vld [vmem:[%s2 + $0x70] sm:$0xff]
        %v384 = vld [vmem:[%s2 + $0x78] sm:$0xff]
        %v385 = vld [vmem:[%s316] sm:$0xff]
        %v386 = vld [vmem:[%s316 + $0x8] sm:$0xff]
        %v387 = vld [vmem:[%s316 + $0x10] sm:$0xff]
        %v388 = vld [vmem:[%s316 + $0x18] sm:$0xff]
        %v389 = vld [vmem:[%s316 + $0x20] sm:$0xff]
        %v390 = vld [vmem:[%s316 + $0x28] sm:$0xff]
        %v391 = vld [vmem:[%s316 + $0x30] sm:$0xff]
        %v392 = vld [vmem:[%s316 + $0x38] sm:$0xff]
        %393 = vmatpush.msra.mxu0 %v384
        %394 = vmatpush.msra.mxu0 %v383
        %395 = vmatpush.msra.mxu0 %v382
        %396 = vmatpush.msra.mxu0 %v381
        %397 = vmatpush.msra.mxu0 %v380
        %398 = vmatpush.msra.mxu0 %v379
        %399 = vmatpush.msra.mxu0 %v378
        %400 = vmatpush.msra.mxu0 %v377
        %401 = vmatpush.msra.mxu0 %v376
        %402 = vmatpush.msra.mxu0 %v375
        %403 = vmatpush.msra.mxu0 %v374
        %404 = vmatpush.msra.mxu0 %v373
        %405 = vmatpush.msra.mxu0 %v372
        %406 = vmatpush.msra.mxu0 %v371
        %407 = vmatpush.msra.mxu0 %v370
        %408 = vmatpush.msra.mxu0 %v369
        %409 = vmatmul.f32.gmra.mxu0 %v385
        %v410 = vpop.f32.mrf.mxu0
        %v411 = vadd.f32 0.0, %v410
        %412 = vmatmul.f32.gmra.mxu0 %v386
        %v413 = vpop.f32.mrf.mxu0
        %v414 = vadd.f32 0.0, %v413
        %415 = vmatmul.f32.gmra.mxu0 %v387
        %v416 = vpop.f32.mrf.mxu0
        %v417 = vadd.f32 0.0, %v416
        %418 = vmatmul.f32.gmra.mxu0 %v388
        %v419 = vpop.f32.mrf.mxu0
        %v420 = vadd.f32 0.0, %v419
        %421 = vmatmul.f32.gmra.mxu0 %v389
        %v422 = vpop.f32.mrf.mxu0
        %v423 = vadd.f32 0.0, %v422
        %424 = vmatmul.f32.gmra.mxu0 %v390
        %v425 = vpop.f32.mrf.mxu0
        %v426 = vadd.f32 0.0, %v425
        %427 = vmatmul.f32.gmra.mxu0 %v391
        %v428 = vpop.f32.mrf.mxu0
        %v429 = vadd.f32 0.0, %v428
        %430 = vmatmul.f32.gmra.mxu0 %v392
        %v431 = vpop.f32.mrf.mxu0
        %v432 = vadd.f32 0.0, %v431
        %433 = vdwg.mxu0
        %v434 = vld [vmem:[%s326] sm:$0xff]
        %v435 = vld [vmem:[%s326 + $0x8] sm:$0xff]
        %v436 = vld [vmem:[%s326 + $0x10] sm:$0xff]
        %v437 = vld [vmem:[%s326 + $0x18] sm:$0xff]
        %v438 = vld [vmem:[%s326 + $0x20] sm:$0xff]
        %v439 = vld [vmem:[%s326 + $0x28] sm:$0xff]
        %v440 = vld [vmem:[%s326 + $0x30] sm:$0xff]
        %v441 = vld [vmem:[%s326 + $0x38] sm:$0xff]
        %442 = vmatpush.msra.mxu0 %v384
        %443 = vmatpush.msra.mxu0 %v383
        %444 = vmatpush.msra.mxu0 %v382
        %445 = vmatpush.msra.mxu0 %v381
        %446 = vmatpush.msra.mxu0 %v380
        %447 = vmatpush.msra.mxu0 %v379
        %448 = vmatpush.msra.mxu0 %v378
        %449 = vmatpush.msra.mxu0 %v377
        %450 = vmatpush.msra.mxu0 %v376
        %451 = vmatpush.msra.mxu0 %v375
        %452 = vmatpush.msra.mxu0 %v374
        %453 = vmatpush.msra.mxu0 %v373
        %454 = vmatpush.msra.mxu0 %v372
        %455 = vmatpush.msra.mxu0 %v371
        %456 = vmatpush.msra.mxu0 %v370
        %457 = vmatpush.msra.mxu0 %v369
        %458 = vmatmul.f32.gmra.mxu0 %v434
        %v459 = vpop.f32.mrf.mxu0
        %v460 = vadd.f32 0.0, %v459
        %461 = vmatmul.f32.gmra.mxu0 %v435
        %v462 = vpop.f32.mrf.mxu0
        %v463 = vadd.f32 0.0, %v462
        %464 = vmatmul.f32.gmra.mxu0 %v436
        %v465 = vpop.f32.mrf.mxu0
        %v466 = vadd.f32 0.0, %v465
        %467 = vmatmul.f32.gmra.mxu0 %v437
        %v468 = vpop.f32.mrf.mxu0
        %v469 = vadd.f32 0.0, %v468
        %470 = vmatmul.f32.gmra.mxu0 %v438
        %v471 = vpop.f32.mrf.mxu0
        %v472 = vadd.f32 0.0, %v471
        %473 = vmatmul.f32.gmra.mxu0 %v439
        %v474 = vpop.f32.mrf.mxu0
        %v475 = vadd.f32 0.0, %v474
        %476 = vmatmul.f32.gmra.mxu0 %v440
        %v477 = vpop.f32.mrf.mxu0
        %v478 = vadd.f32 0.0, %v477
        %479 = vmatmul.f32.gmra.mxu0 %v441
        %v480 = vpop.f32.mrf.mxu0
        %v481 = vadd.f32 0.0, %v480
        %482 = vdwg.mxu0
        %v483 = vld [vmem:[%s3] sm:$0xff]
        %v484 = vld [vmem:[%s4] sm:$0xff]
        %vm485 = vcmask 64512
        %v487 = vsel %vm485, %v460, 0
        %v490 = vsel %vm485, %v463, 0
        %v493 = vsel %vm485, %v466, 0
        %v496 = vsel %vm485, %v469, 0
        %v499 = vsel %vm485, %v472, 0
        %v502 = vsel %vm485, %v475, 0
        %v505 = vsel %vm485, %v478, 0
        %v508 = vsel %vm485, %v481, 0
        %510 = vmatpush.msra.mxu0 0.0
        %511 = vmatpush.msra.mxu0 0.0
        %512 = vmatpush.msra.mxu0 0.0
        %513 = vmatpush.msra.mxu0 0.0
        %514 = vmatpush.msra.mxu0 0.0
        %515 = vmatpush.msra.mxu0 0.0
        %516 = vmatpush.msra.mxu0 0.0
        %517 = vmatpush.msra.mxu0 0.0
        %518 = vmatpush.msra.mxu0 0.0
        %519 = vmatpush.msra.mxu0 0.0
        %520 = vmatpush.msra.mxu0 0.0
        %521 = vmatpush.msra.mxu0 0.0
        %522 = vmatpush.msra.mxu0 0.0
        %523 = vmatpush.msra.mxu0 0.0
        %524 = vmatpush.msra.mxu0 0.0
        %525 = vmatpush.msra.mxu0 %v484
        %526 = vmatmul.f32.gmra.mxu0 %v487
        %v527 = vpop.f32.mrf.mxu0
        %v528 = vadd.f32 0.0, %v527
        %529 = vmatmul.f32.gmra.mxu0 %v490
        %v530 = vpop.f32.mrf.mxu0
        %v531 = vadd.f32 0.0, %v530
        %532 = vmatmul.f32.gmra.mxu0 %v493
        %v533 = vpop.f32.mrf.mxu0
        %v534 = vadd.f32 0.0, %v533
        %535 = vmatmul.f32.gmra.mxu0 %v496
        %v536 = vpop.f32.mrf.mxu0
        %v537 = vadd.f32 0.0, %v536
        %538 = vmatmul.f32.gmra.mxu0 %v499
        %v539 = vpop.f32.mrf.mxu0
        %v540 = vadd.f32 0.0, %v539
        %541 = vmatmul.f32.gmra.mxu0 %v502
        %v542 = vpop.f32.mrf.mxu0
        %v543 = vadd.f32 0.0, %v542
        %544 = vmatmul.f32.gmra.mxu0 %v505
        %v545 = vpop.f32.mrf.mxu0
        %v546 = vadd.f32 0.0, %v545
        %547 = vmatmul.f32.gmra.mxu0 %v508
        %v548 = vpop.f32.mrf.mxu0
        %v549 = vadd.f32 0.0, %v548
        %550 = vdwg.mxu0
        %v552 = vsel %vm485, %v411, 0
        %v555 = vsel %vm485, %v414, 0
        %v558 = vsel %vm485, %v417, 0
        %v561 = vsel %vm485, %v420, 0
        %v564 = vsel %vm485, %v423, 0
        %v567 = vsel %vm485, %v426, 0
        %v570 = vsel %vm485, %v429, 0
        %v573 = vsel %vm485, %v432, 0
        %575 = vmatpush.msra.mxu0 0.0
        %576 = vmatpush.msra.mxu0 0.0
        %577 = vmatpush.msra.mxu0 0.0
        %578 = vmatpush.msra.mxu0 0.0
        %579 = vmatpush.msra.mxu0 0.0
        %580 = vmatpush.msra.mxu0 0.0
        %581 = vmatpush.msra.mxu0 0.0
        %582 = vmatpush.msra.mxu0 0.0
        %583 = vmatpush.msra.mxu0 0.0
        %584 = vmatpush.msra.mxu0 0.0
        %585 = vmatpush.msra.mxu0 0.0
        %586 = vmatpush.msra.mxu0 0.0
        %587 = vmatpush.msra.mxu0 0.0
        %588 = vmatpush.msra.mxu0 0.0
        %589 = vmatpush.msra.mxu0 0.0
        %590 = vmatpush.msra.mxu0 %v483
        %591 = vmatmul.f32.gmra.mxu0 %v552
        %v592 = vpop.f32.mrf.mxu0
        %v593 = vadd.f32 %v528, %v592
        %594 = vmatmul.f32.gmra.mxu0 %v555
        %v595 = vpop.f32.mrf.mxu0
        %v596 = vadd.f32 %v531, %v595
        %597 = vmatmul.f32.gmra.mxu0 %v558
        %v598 = vpop.f32.mrf.mxu0
        %v599 = vadd.f32 %v534, %v598
        %600 = vmatmul.f32.gmra.mxu0 %v561
        %v601 = vpop.f32.mrf.mxu0
        %v602 = vadd.f32 %v537, %v601
        %603 = vmatmul.f32.gmra.mxu0 %v564
        %v604 = vpop.f32.mrf.mxu0
        %v605 = vadd.f32 %v540, %v604
        %606 = vmatmul.f32.gmra.mxu0 %v567
        %v607 = vpop.f32.mrf.mxu0
        %v608 = vadd.f32 %v543, %v607
        %609 = vmatmul.f32.gmra.mxu0 %v570
        %v610 = vpop.f32.mrf.mxu0
        %v611 = vadd.f32 %v546, %v610
        %612 = vmatmul.f32.gmra.mxu0 %v573
        %v613 = vpop.f32.mrf.mxu0
        %v614 = vadd.f32 %v549, %v613
        %615 = vdwg.mxu0
        %s616 = scalar_lea.vmem %s316, 64 [#allocation2]
        %v617 = vld [vmem:[%s616] sm:$0xff]
        %v618 = vld [vmem:[%s616 + $0x8] sm:$0xff]
        %v619 = vld [vmem:[%s616 + $0x10] sm:$0xff]
        %v620 = vld [vmem:[%s616 + $0x18] sm:$0xff]
        %v621 = vld [vmem:[%s616 + $0x20] sm:$0xff]
        %v622 = vld [vmem:[%s616 + $0x28] sm:$0xff]
        %v623 = vld [vmem:[%s616 + $0x30] sm:$0xff]
        %v624 = vld [vmem:[%s616 + $0x38] sm:$0xff]
        %625 = vmatpush.msra.mxu0 %v384
        %626 = vmatpush.msra.mxu0 %v383
        %627 = vmatpush.msra.mxu0 %v382
        %628 = vmatpush.msra.mxu0 %v381
        %629 = vmatpush.msra.mxu0 %v380
        %630 = vmatpush.msra.mxu0 %v379
        %631 = vmatpush.msra.mxu0 %v378
        %632 = vmatpush.msra.mxu0 %v377
        %633 = vmatpush.msra.mxu0 %v376
        %634 = vmatpush.msra.mxu0 %v375
        %635 = vmatpush.msra.mxu0 %v374
        %636 = vmatpush.msra.mxu0 %v373
        %637 = vmatpush.msra.mxu0 %v372
        %638 = vmatpush.msra.mxu0 %v371
        %639 = vmatpush.msra.mxu0 %v370
        %640 = vmatpush.msra.mxu0 %v369
        %641 = vmatmul.f32.gmra.mxu0 %v617
        %v642 = vpop.f32.mrf.mxu0
        %v643 = vadd.f32 0.0, %v642
        %644 = vmatmul.f32.gmra.mxu0 %v618
        %v645 = vpop.f32.mrf.mxu0
        %v646 = vadd.f32 0.0, %v645
        %647 = vmatmul.f32.gmra.mxu0 %v619
        %v648 = vpop.f32.mrf.mxu0
        %v649 = vadd.f32 0.0, %v648
        %650 = vmatmul.f32.gmra.mxu0 %v620
        %v651 = vpop.f32.mrf.mxu0
        %v652 = vadd.f32 0.0, %v651
        %653 = vmatmul.f32.gmra.mxu0 %v621
        %v654 = vpop.f32.mrf.mxu0
        %v655 = vadd.f32 0.0, %v654
        %656 = vmatmul.f32.gmra.mxu0 %v622
        %v657 = vpop.f32.mrf.mxu0
        %v658 = vadd.f32 0.0, %v657
        %659 = vmatmul.f32.gmra.mxu0 %v623
        %v660 = vpop.f32.mrf.mxu0
        %v661 = vadd.f32 0.0, %v660
        %662 = vmatmul.f32.gmra.mxu0 %v624
        %v663 = vpop.f32.mrf.mxu0
        %v664 = vadd.f32 0.0, %v663
        %665 = vdwg.mxu0
        %s666 = scalar_lea.vmem %s326, 64 [#allocation4]
        %v667 = vld [vmem:[%s666] sm:$0xff]
        %v668 = vld [vmem:[%s666 + $0x8] sm:$0xff]
        %v669 = vld [vmem:[%s666 + $0x10] sm:$0xff]
        %v670 = vld [vmem:[%s666 + $0x18] sm:$0xff]
        %v671 = vld [vmem:[%s666 + $0x20] sm:$0xff]
        %v672 = vld [vmem:[%s666 + $0x28] sm:$0xff]
        %v673 = vld [vmem:[%s666 + $0x30] sm:$0xff]
        %v674 = vld [vmem:[%s666 + $0x38] sm:$0xff]
        %675 = vmatpush.msra.mxu0 %v384
        %676 = vmatpush.msra.mxu0 %v383
        %677 = vmatpush.msra.mxu0 %v382
        %678 = vmatpush.msra.mxu0 %v381
        %679 = vmatpush.msra.mxu0 %v380
        %680 = vmatpush.msra.mxu0 %v379
        %681 = vmatpush.msra.mxu0 %v378
        %682 = vmatpush.msra.mxu0 %v377
        %683 = vmatpush.msra.mxu0 %v376
        %684 = vmatpush.msra.mxu0 %v375
        %685 = vmatpush.msra.mxu0 %v374
        %686 = vmatpush.msra.mxu0 %v373
        %687 = vmatpush.msra.mxu0 %v372
        %688 = vmatpush.msra.mxu0 %v371
        %689 = vmatpush.msra.mxu0 %v370
        %690 = vmatpush.msra.mxu0 %v369
        %691 = vmatmul.f32.gmra.mxu0 %v667
        %v692 = vpop.f32.mrf.mxu0
        %v693 = vadd.f32 0.0, %v692
        %694 = vmatmul.f32.gmra.mxu0 %v668
        %v695 = vpop.f32.mrf.mxu0
        %v696 = vadd.f32 0.0, %v695
        %697 = vmatmul.f32.gmra.mxu0 %v669
        %v698 = vpop.f32.mrf.mxu0
        %v699 = vadd.f32 0.0, %v698
        %700 = vmatmul.f32.gmra.mxu0 %v670
        %v701 = vpop.f32.mrf.mxu0
        %v702 = vadd.f32 0.0, %v701
        %703 = vmatmul.f32.gmra.mxu0 %v671
        %v704 = vpop.f32.mrf.mxu0
        %v705 = vadd.f32 0.0, %v704
        %706 = vmatmul.f32.gmra.mxu0 %v672
        %v707 = vpop.f32.mrf.mxu0
        %v708 = vadd.f32 0.0, %v707
        %709 = vmatmul.f32.gmra.mxu0 %v673
        %v710 = vpop.f32.mrf.mxu0
        %v711 = vadd.f32 0.0, %v710
        %712 = vmatmul.f32.gmra.mxu0 %v674
        %v713 = vpop.f32.mrf.mxu0
        %v714 = vadd.f32 0.0, %v713
        %715 = vdwg.mxu0
        %s716 = scalar_lea.vmem %s3, 8
        %v717 = vld [vmem:[%s716] sm:$0xff]
        %v719 = vsel %vm485, %v643, 0
        %v722 = vsel %vm485, %v646, 0
        %v725 = vsel %vm485, %v649, 0
        %v728 = vsel %vm485, %v652, 0
        %v731 = vsel %vm485, %v655, 0
        %v734 = vsel %vm485, %v658, 0
        %v737 = vsel %vm485, %v661, 0
        %v740 = vsel %vm485, %v664, 0
        %742 = vmatpush.msra.mxu0 0.0
        %743 = vmatpush.msra.mxu0 0.0
        %744 = vmatpush.msra.mxu0 0.0
        %745 = vmatpush.msra.mxu0 0.0
        %746 = vmatpush.msra.mxu0 0.0
        %747 = vmatpush.msra.mxu0 0.0
        %748 = vmatpush.msra.mxu0 0.0
        %749 = vmatpush.msra.mxu0 0.0
        %750 = vmatpush.msra.mxu0 0.0
        %751 = vmatpush.msra.mxu0 0.0
        %752 = vmatpush.msra.mxu0 0.0
        %753 = vmatpush.msra.mxu0 0.0
        %754 = vmatpush.msra.mxu0 0.0
        %755 = vmatpush.msra.mxu0 0.0
        %756 = vmatpush.msra.mxu0 0.0
        %757 = vmatpush.msra.mxu0 %v717
        %758 = vmatmul.f32.gmra.mxu0 %v719
        %v759 = vpop.f32.mrf.mxu0
        %v760 = vadd.f32 0.0, %v759
        %761 = vmatmul.f32.gmra.mxu0 %v722
        %v762 = vpop.f32.mrf.mxu0
        %v763 = vadd.f32 0.0, %v762
        %764 = vmatmul.f32.gmra.mxu0 %v725
        %v765 = vpop.f32.mrf.mxu0
        %v766 = vadd.f32 0.0, %v765
        %767 = vmatmul.f32.gmra.mxu0 %v728
        %v768 = vpop.f32.mrf.mxu0
        %v769 = vadd.f32 0.0, %v768
        %770 = vmatmul.f32.gmra.mxu0 %v731
        %v771 = vpop.f32.mrf.mxu0
        %v772 = vadd.f32 0.0, %v771
        %773 = vmatmul.f32.gmra.mxu0 %v734
        %v774 = vpop.f32.mrf.mxu0
        %v775 = vadd.f32 0.0, %v774
        %776 = vmatmul.f32.gmra.mxu0 %v737
        %v777 = vpop.f32.mrf.mxu0
        %v778 = vadd.f32 0.0, %v777
        %779 = vmatmul.f32.gmra.mxu0 %v740
        %v780 = vpop.f32.mrf.mxu0
        %v781 = vadd.f32 0.0, %v780
        %782 = vdwg.mxu0
        %v783 = vadd.f32 %v593, %v760
        %v784 = vadd.f32 %v596, %v763
        %v785 = vadd.f32 %v599, %v766
        %v786 = vadd.f32 %v602, %v769
        %v787 = vadd.f32 %v605, %v772
        %v788 = vadd.f32 %v608, %v775
        %v789 = vadd.f32 %v611, %v778
        %v790 = vadd.f32 %v614, %v781
        %s791 = scalar_lea.vmem %s4, 8
        %v792 = vld [vmem:[%s791] sm:$0xff]
        %v794 = vsel %vm485, %v693, 0
        %v797 = vsel %vm485, %v696, 0
        %v800 = vsel %vm485, %v699, 0
        %v803 = vsel %vm485, %v702, 0
        %v806 = vsel %vm485, %v705, 0
        %v809 = vsel %vm485, %v708, 0
        %v812 = vsel %vm485, %v711, 0
        %v815 = vsel %vm485, %v714, 0
        %817 = vmatpush.msra.mxu0 0.0
        %818 = vmatpush.msra.mxu0 0.0
        %819 = vmatpush.msra.mxu0 0.0
        %820 = vmatpush.msra.mxu0 0.0
        %821 = vmatpush.msra.mxu0 0.0
        %822 = vmatpush.msra.mxu0 0.0
        %823 = vmatpush.msra.mxu0 0.0
        %824 = vmatpush.msra.mxu0 0.0
        %825 = vmatpush.msra.mxu0 0.0
        %826 = vmatpush.msra.mxu0 0.0
        %827 = vmatpush.msra.mxu0 0.0
        %828 = vmatpush.msra.mxu0 0.0
        %829 = vmatpush.msra.mxu0 0.0
        %830 = vmatpush.msra.mxu0 0.0
        %831 = vmatpush.msra.mxu0 0.0
        %832 = vmatpush.msra.mxu0 %v792
        %833 = vmatmul.f32.gmra.mxu0 %v794
        %v834 = vpop.f32.mrf.mxu0
        %v835 = vadd.f32 0.0, %v834
        %836 = vmatmul.f32.gmra.mxu0 %v797
        %v837 = vpop.f32.mrf.mxu0
        %v838 = vadd.f32 0.0, %v837
        %839 = vmatmul.f32.gmra.mxu0 %v800
        %v840 = vpop.f32.mrf.mxu0
        %v841 = vadd.f32 0.0, %v840
        %842 = vmatmul.f32.gmra.mxu0 %v803
        %v843 = vpop.f32.mrf.mxu0
        %v844 = vadd.f32 0.0, %v843
        %845 = vmatmul.f32.gmra.mxu0 %v806
        %v846 = vpop.f32.mrf.mxu0
        %v847 = vadd.f32 0.0, %v846
        %848 = vmatmul.f32.gmra.mxu0 %v809
        %v849 = vpop.f32.mrf.mxu0
        %v850 = vadd.f32 0.0, %v849
        %851 = vmatmul.f32.gmra.mxu0 %v812
        %v852 = vpop.f32.mrf.mxu0
        %v853 = vadd.f32 0.0, %v852
        %854 = vmatmul.f32.gmra.mxu0 %v815
        %v855 = vpop.f32.mrf.mxu0
        %v856 = vadd.f32 0.0, %v855
        %857 = vdwg.mxu0
        %v858 = vadd.f32 %v783, %v835
        %v859 = vadd.f32 %v784, %v838
        %v860 = vadd.f32 %v785, %v841
        %v861 = vadd.f32 %v786, %v844
        %v862 = vadd.f32 %v787, %v847
        %v863 = vadd.f32 %v788, %v850
        %v864 = vadd.f32 %v789, %v853
        %v865 = vadd.f32 %v790, %v856
        %s866 = scalar_lea.vmem %s316, 128 [#allocation2]
        %v867 = vld [vmem:[%s866] sm:$0xff]
        %v868 = vld [vmem:[%s866 + $0x8] sm:$0xff]
        %v869 = vld [vmem:[%s866 + $0x10] sm:$0xff]
        %v870 = vld [vmem:[%s866 + $0x18] sm:$0xff]
        %v871 = vld [vmem:[%s866 + $0x20] sm:$0xff]
        %v872 = vld [vmem:[%s866 + $0x28] sm:$0xff]
        %v873 = vld [vmem:[%s866 + $0x30] sm:$0xff]
        %v874 = vld [vmem:[%s866 + $0x38] sm:$0xff]
        %875 = vmatpush.msra.mxu0 %v384
        %876 = vmatpush.msra.mxu0 %v383
        %877 = vmatpush.msra.mxu0 %v382
        %878 = vmatpush.msra.mxu0 %v381
        %879 = vmatpush.msra.mxu0 %v380
        %880 = vmatpush.msra.mxu0 %v379
        %881 = vmatpush.msra.mxu0 %v378
        %882 = vmatpush.msra.mxu0 %v377
        %883 = vmatpush.msra.mxu0 %v376
        %884 = vmatpush.msra.mxu0 %v375
        %885 = vmatpush.msra.mxu0 %v374
        %886 = vmatpush.msra.mxu0 %v373
        %887 = vmatpush.msra.mxu0 %v372
        %888 = vmatpush.msra.mxu0 %v371
        %889 = vmatpush.msra.mxu0 %v370
        %890 = vmatpush.msra.mxu0 %v369
        %891 = vmatmul.f32.gmra.mxu0 %v867
        %v892 = vpop.f32.mrf.mxu0
        %v893 = vadd.f32 0.0, %v892
        %894 = vmatmul.f32.gmra.mxu0 %v868
        %v895 = vpop.f32.mrf.mxu0
        %v896 = vadd.f32 0.0, %v895
        %897 = vmatmul.f32.gmra.mxu0 %v869
        %v898 = vpop.f32.mrf.mxu0
        %v899 = vadd.f32 0.0, %v898
        %900 = vmatmul.f32.gmra.mxu0 %v870
        %v901 = vpop.f32.mrf.mxu0
        %v902 = vadd.f32 0.0, %v901
        %903 = vmatmul.f32.gmra.mxu0 %v871
        %v904 = vpop.f32.mrf.mxu0
        %v905 = vadd.f32 0.0, %v904
        %906 = vmatmul.f32.gmra.mxu0 %v872
        %v907 = vpop.f32.mrf.mxu0
        %v908 = vadd.f32 0.0, %v907
        %909 = vmatmul.f32.gmra.mxu0 %v873
        %v910 = vpop.f32.mrf.mxu0
        %v911 = vadd.f32 0.0, %v910
        %912 = vmatmul.f32.gmra.mxu0 %v874
        %v913 = vpop.f32.mrf.mxu0
        %v914 = vadd.f32 0.0, %v913
        %915 = vdwg.mxu0
        %s916 = scalar_lea.vmem %s326, 128 [#allocation4]
        %v917 = vld [vmem:[%s916] sm:$0xff]
        %v918 = vld [vmem:[%s916 + $0x8] sm:$0xff]
        %v919 = vld [vmem:[%s916 + $0x10] sm:$0xff]
        %v920 = vld [vmem:[%s916 + $0x18] sm:$0xff]
        %v921 = vld [vmem:[%s916 + $0x20] sm:$0xff]
        %v922 = vld [vmem:[%s916 + $0x28] sm:$0xff]
        %v923 = vld [vmem:[%s916 + $0x30] sm:$0xff]
        %v924 = vld [vmem:[%s916 + $0x38] sm:$0xff]
        %925 = vmatpush.msra.mxu0 %v384
        %926 = vmatpush.msra.mxu0 %v383
        %927 = vmatpush.msra.mxu0 %v382
        %928 = vmatpush.msra.mxu0 %v381
        %929 = vmatpush.msra.mxu0 %v380
        %930 = vmatpush.msra.mxu0 %v379
        %931 = vmatpush.msra.mxu0 %v378
        %932 = vmatpush.msra.mxu0 %v377
        %933 = vmatpush.msra.mxu0 %v376
        %934 = vmatpush.msra.mxu0 %v375
        %935 = vmatpush.msra.mxu0 %v374
        %936 = vmatpush.msra.mxu0 %v373
        %937 = vmatpush.msra.mxu0 %v372
        %938 = vmatpush.msra.mxu0 %v371
        %939 = vmatpush.msra.mxu0 %v370
        %940 = vmatpush.msra.mxu0 %v369
        %941 = vmatmul.f32.gmra.mxu0 %v917
        %v942 = vpop.f32.mrf.mxu0
        %v943 = vadd.f32 0.0, %v942
        %944 = vmatmul.f32.gmra.mxu0 %v918
        %v945 = vpop.f32.mrf.mxu0
        %v946 = vadd.f32 0.0, %v945
        %947 = vmatmul.f32.gmra.mxu0 %v919
        %v948 = vpop.f32.mrf.mxu0
        %v949 = vadd.f32 0.0, %v948
        %950 = vmatmul.f32.gmra.mxu0 %v920
        %v951 = vpop.f32.mrf.mxu0
        %v952 = vadd.f32 0.0, %v951
        %953 = vmatmul.f32.gmra.mxu0 %v921
        %v954 = vpop.f32.mrf.mxu0
        %v955 = vadd.f32 0.0, %v954
        %956 = vmatmul.f32.gmra.mxu0 %v922
        %v957 = vpop.f32.mrf.mxu0
        %v958 = vadd.f32 0.0, %v957
        %959 = vmatmul.f32.gmra.mxu0 %v923
        %v960 = vpop.f32.mrf.mxu0
        %v961 = vadd.f32 0.0, %v960
        %962 = vmatmul.f32.gmra.mxu0 %v924
        %v963 = vpop.f32.mrf.mxu0
        %v964 = vadd.f32 0.0, %v963
        %965 = vdwg.mxu0
        %s966 = scalar_lea.vmem %s3, 16
        %v967 = vld [vmem:[%s966] sm:$0xff]
        %v969 = vsel %vm485, %v893, 0
        %v972 = vsel %vm485, %v896, 0
        %v975 = vsel %vm485, %v899, 0
        %v978 = vsel %vm485, %v902, 0
        %v981 = vsel %vm485, %v905, 0
        %v984 = vsel %vm485, %v908, 0
        %v987 = vsel %vm485, %v911, 0
        %v990 = vsel %vm485, %v914, 0
        %992 = vmatpush.msra.mxu0 0.0
        %993 = vmatpush.msra.mxu0 0.0
        %994 = vmatpush.msra.mxu0 0.0
        %995 = vmatpush.msra.mxu0 0.0
        %996 = vmatpush.msra.mxu0 0.0
        %997 = vmatpush.msra.mxu0 0.0
        %998 = vmatpush.msra.mxu0 0.0
        %999 = vmatpush.msra.mxu0 0.0
        %1000 = vmatpush.msra.mxu0 0.0
        %1001 = vmatpush.msra.mxu0 0.0
        %1002 = vmatpush.msra.mxu0 0.0
        %1003 = vmatpush.msra.mxu0 0.0
        %1004 = vmatpush.msra.mxu0 0.0
        %1005 = vmatpush.msra.mxu0 0.0
        %1006 = vmatpush.msra.mxu0 0.0
        %1007 = vmatpush.msra.mxu0 %v967
        %1008 = vmatmul.f32.gmra.mxu0 %v969
        %v1009 = vpop.f32.mrf.mxu0
        %v1010 = vadd.f32 0.0, %v1009
        %1011 = vmatmul.f32.gmra.mxu0 %v972
        %v1012 = vpop.f32.mrf.mxu0
        %v1013 = vadd.f32 0.0, %v1012
        %1014 = vmatmul.f32.gmra.mxu0 %v975
        %v1015 = vpop.f32.mrf.mxu0
        %v1016 = vadd.f32 0.0, %v1015
        %1017 = vmatmul.f32.gmra.mxu0 %v978
        %v1018 = vpop.f32.mrf.mxu0
        %v1019 = vadd.f32 0.0, %v1018
        %1020 = vmatmul.f32.gmra.mxu0 %v981
        %v1021 = vpop.f32.mrf.mxu0
        %v1022 = vadd.f32 0.0, %v1021
        %1023 = vmatmul.f32.gmra.mxu0 %v984
        %v1024 = vpop.f32.mrf.mxu0
        %v1025 = vadd.f32 0.0, %v1024
        %1026 = vmatmul.f32.gmra.mxu0 %v987
        %v1027 = vpop.f32.mrf.mxu0
        %v1028 = vadd.f32 0.0, %v1027
        %1029 = vmatmul.f32.gmra.mxu0 %v990
        %v1030 = vpop.f32.mrf.mxu0
        %v1031 = vadd.f32 0.0, %v1030
        %1032 = vdwg.mxu0
        %v1033 = vadd.f32 %v858, %v1010
        %v1034 = vadd.f32 %v859, %v1013
        %v1035 = vadd.f32 %v860, %v1016
        %v1036 = vadd.f32 %v861, %v1019
        %v1037 = vadd.f32 %v862, %v1022
        %v1038 = vadd.f32 %v863, %v1025
        %v1039 = vadd.f32 %v864, %v1028
        %v1040 = vadd.f32 %v865, %v1031
        %s1041 = scalar_lea.vmem %s4, 16
        %v1042 = vld [vmem:[%s1041] sm:$0xff]
        %v1044 = vsel %vm485, %v943, 0
        %v1047 = vsel %vm485, %v946, 0
        %v1050 = vsel %vm485, %v949, 0
        %v1053 = vsel %vm485, %v952, 0
        %v1056 = vsel %vm485, %v955, 0
        %v1059 = vsel %vm485, %v958, 0
        %v1062 = vsel %vm485, %v961, 0
        %v1065 = vsel %vm485, %v964, 0
        %1067 = vmatpush.msra.mxu0 0.0
        %1068 = vmatpush.msra.mxu0 0.0
        %1069 = vmatpush.msra.mxu0 0.0
        %1070 = vmatpush.msra.mxu0 0.0
        %1071 = vmatpush.msra.mxu0 0.0
        %1072 = vmatpush.msra.mxu0 0.0
        %1073 = vmatpush.msra.mxu0 0.0
        %1074 = vmatpush.msra.mxu0 0.0
        %1075 = vmatpush.msra.mxu0 0.0
        %1076 = vmatpush.msra.mxu0 0.0
        %1077 = vmatpush.msra.mxu0 0.0
        %1078 = vmatpush.msra.mxu0 0.0
        %1079 = vmatpush.msra.mxu0 0.0
        %1080 = vmatpush.msra.mxu0 0.0
        %1081 = vmatpush.msra.mxu0 0.0
        %1082 = vmatpush.msra.mxu0 %v1042
        %1083 = vmatmul.f32.gmra.mxu0 %v1044
        %v1084 = vpop.f32.mrf.mxu0
        %v1085 = vadd.f32 0.0, %v1084
        %1086 = vmatmul.f32.gmra.mxu0 %v1047
        %v1087 = vpop.f32.mrf.mxu0
        %v1088 = vadd.f32 0.0, %v1087
        %1089 = vmatmul.f32.gmra.mxu0 %v1050
        %v1090 = vpop.f32.mrf.mxu0
        %v1091 = vadd.f32 0.0, %v1090
        %1092 = vmatmul.f32.gmra.mxu0 %v1053
        %v1093 = vpop.f32.mrf.mxu0
        %v1094 = vadd.f32 0.0, %v1093
        %1095 = vmatmul.f32.gmra.mxu0 %v1056
        %v1096 = vpop.f32.mrf.mxu0
        %v1097 = vadd.f32 0.0, %v1096
        %1098 = vmatmul.f32.gmra.mxu0 %v1059
        %v1099 = vpop.f32.mrf.mxu0
        %v1100 = vadd.f32 0.0, %v1099
        %1101 = vmatmul.f32.gmra.mxu0 %v1062
        %v1102 = vpop.f32.mrf.mxu0
        %v1103 = vadd.f32 0.0, %v1102
        %1104 = vmatmul.f32.gmra.mxu0 %v1065
        %v1105 = vpop.f32.mrf.mxu0
        %v1106 = vadd.f32 0.0, %v1105
        %1107 = vdwg.mxu0
        %v1108 = vadd.f32 %v1033, %v1085
        %v1109 = vadd.f32 %v1034, %v1088
        %v1110 = vadd.f32 %v1035, %v1091
        %v1111 = vadd.f32 %v1036, %v1094
        %v1112 = vadd.f32 %v1037, %v1097
        %v1113 = vadd.f32 %v1038, %v1100
        %v1114 = vadd.f32 %v1039, %v1103
        %v1115 = vadd.f32 %v1040, %v1106
        %v1116 = vld [vmem:[%s5] sm:$0x1]
        %v1118 = vperm.slane %v1116, 0
        %v1120 = vadd.f32 %v1108, %v1118
        %v1121 = vadd.f32 %v1109, %v1118
        %v1122 = vadd.f32 %v1110, %v1118
        %v1123 = vadd.f32 %v1111, %v1118
        %v1124 = vadd.f32 %v1112, %v1118
        %v1125 = vadd.f32 %v1113, %v1118
        %v1126 = vadd.f32 %v1114, %v1118
        %v1127 = vadd.f32 %v1115, %v1118
        %1128 = vst.msk [vmem:[%s367] sm:$0xff] %vm485, %v1120
        %1129 = vst.msk [vmem:[%s367 + $0x8] sm:$0xff] %vm485, %v1121
        %1130 = vst.msk [vmem:[%s367 + $0x10] sm:$0xff] %vm485, %v1122
        %1131 = vst.msk [vmem:[%s367 + $0x18] sm:$0xff] %vm485, %v1123
        %1132 = vst.msk [vmem:[%s367 + $0x20] sm:$0xff] %vm485, %v1124
        %1133 = vst.msk [vmem:[%s367 + $0x28] sm:$0xff] %vm485, %v1125
        %1134 = vst.msk [vmem:[%s367 + $0x30] sm:$0xff] %vm485, %v1126
        %1135 = vst.msk [vmem:[%s367 + $0x38] sm:$0xff] %vm485, %v1127
        %s1136 = smul.u32 8, %s23
        %p1137 = scmp.lt.s32.totalorder %s1136, 15
        %s1138 = scalar_select %p1137, %s1136, 15
        %s1139 = smul.addr %s1138, 8
        %s1140 = scalar_lea.vmem %s6, %s1139
        // Predicated region
        $region53: #{chebnet_edge_forward.3} parent=43 // pred_check
          %p1141 = pneg %p177
        $region54: #{chebnet_edge_forward.3} parent=43 // pred_check_branch
          %1143 = sbr.rel (%p1141) target = $region56
        $region55: #{chebnet_edge_forward.3} parent=43 // pred_region
          %s1144 = smul.u32 8, %s23
        $region56: #{chebnet_edge_forward.3} parent=43 // pred_fallthru
          _
      $region44: #{chebnet_edge_forward.3} parent=5 // pred_fallthru
        _
      %p1145 = scmp.le.s32.totalorder 2, %s18
      // Predicated region
      $region57: #{chebnet_edge_forward.3} parent=5 // pred_check
        %p1146 = pneg %p1145
      $region58: #{chebnet_edge_forward.3} parent=5 // pred_check_branch
        %1148 = sbr.rel (%p1146) target = $region60
      $region59: #{chebnet_edge_forward.3} parent=5 // pred_region
        %s1149 = ssub.s32 %s18, 2
        // Predicated region
        $region61: #{chebnet_edge_forward.3} parent=59 // pred_check
          %p1150 = pneg %p183
        $region62: #{chebnet_edge_forward.3} parent=59 // pred_check_branch
          %1152 = sbr.rel (%p1150) target = $region64
        $region63: #{chebnet_edge_forward.3} parent=59 // pred_region
          %s1153 = smul.u32 8, %s24
          %p1154 = scmp.lt.s32.totalorder %s1153, 15
          %s1155 = scalar_select %p1154, %s1153, 15
          %s1156 = smul.addr %s1155, 8
          %s1157 = scalar_lea.vmem %s6, %s1156
        $region64: #{chebnet_edge_forward.3} parent=59 // pred_fallthru
          _
      $region60: #{chebnet_edge_forward.3} parent=5 // pred_fallthru
        _
    $region6: #{chebnet_edge_forward.3} parent=1 // loop_footer
      %s22 = sadd.s32 1, %s18
    $region7: #{chebnet_edge_forward.3} parent=1 // loop_footer_branch
      %17 = sbr.rel target = $region3
    $region8: #{chebnet_edge_forward.3} parent=1 // loop_exit
      _
    %1158 = vsyncpa [#allocation3], 1
    %s1159 = scalar_lea.sflag [#allocation3], 1
    %1160 = vsyncpa %s1159, 1
    %1161 = vsyncpa [#allocation5], 1
    %s1162 = scalar_lea.sflag [#allocation5], 1
    %1163 = vsyncpa %s1162, 1

// kernel: chebnet_edge_forward.5
$region0: #{chebnet_edge_forward.5}
  #allocation0 [shape = 'u32[]', space=smem, size = 0x4, offset = 0x4, fixed_abs, tag = 'smem constant byte address 0x4 - core index']
  #allocation1 [shape = 'u32[72,128]{1,0:T(1,128)}', space=vmem, size = 0x9000, scoped, tag = 'internal scratch']
  %s0 = inlined_call_operand.vmem [shape: f32[128,8], index: 0, kind: input, shape index: {}]
  %s1 = inlined_call_operand.vmem [shape: s32[96,1], index: 1, kind: input, shape index: {}]
  %s2 = inlined_call_operand.vmem [shape: s32[96,1], index: 2, kind: input, shape index: {}]
  %s3 = inlined_call_operand.vmem [shape: f32[8,2], index: 3, kind: input, shape index: {}]
  %s4 = inlined_call_operand.vmem [shape: f32[8,2], index: 4, kind: input, shape index: {}]
  %s5 = inlined_call_operand.vmem [shape: f32[1,2], index: 5, kind: input, shape index: {}]
  %s6 = inlined_call_operand.vmem [shape: f32[96,2], index: 6, kind: output, shape index: {}]
  %s7 = sld [smem:[#allocation0]]
  $region57: #{chebnet_edge_forward.5} parent=0
    _
  %s9 = ssub.s32 1, %s7
  %s10 = scalar_select 0, %s9, %s7
  loop: start=0, step=1, limit=5
  $region2: #{chebnet_edge_forward.5} parent=0 // loop_pre_header
    _
  $region3: #{chebnet_edge_forward.5} parent=0 // loop_header
    %s12 = sphi 0, %s16
    %p13 = scmp.ge.s32.totalorder %s12, 5
    %s20 = sphi 0, %s20
    %s22 = sphi 0, %s20
    %s23 = sphi 0, %s22
    %s37 = sphi 0, %s23
    %s43 = sphi 0, %s45
    %s46 = sphi 0, %s43
    %s47 = sphi 0, %s46
    %s63 = sphi 0, %s47
    %s69 = sphi 0, %s71
    %s72 = sphi 0, %s69
    %s73 = sphi 0, %s72
    %s89 = sphi 0, %s73
    %s93 = sphi 0, %s93
    %s95 = sphi 0, %s93
    %s96 = sphi 0, %s95
    %s110 = sphi 0, %s96
    %s114 = sphi 0, %s114
    %s116 = sphi 0, %s114
    %s117 = sphi 0, %s116
    %s131 = sphi 0, %s117
    %s135 = sphi 0, %s135
    %s137 = sphi 0, %s135
    %s138 = sphi 0, %s137
    %s152 = sphi 0, %s138
    %s158 = sphi 0, %s160
    %s161 = sphi 0, %s158
    %s162 = sphi 0, %s161
    %s178 = sphi 0, %s162
  $region4: #{chebnet_edge_forward.5} parent=0 // loop_header_branch
    %15 = sbr.rel (%p13) target = $region8
  $region5: #{chebnet_edge_forward.5} parent=0 // loop_body
    %s17 = ssub.s32 %s12, 1
    %s18 = ssub.s32 %s12, 2
    %s19 = sadd.s32 %s12, 1
    %s21 = sadd.s32 %s20, 1
    %p24 = scmp.eq.s32.totalorder %s12, 2
    %p25 = scmp.ne.s32.totalorder %s20, %s22
    %p26 = scmp.eq.s32.totalorder %s12, 0
    %p27 = por %p25, %p26
    %p28 = scmp.ne.s32.totalorder %s20, %s22
    %p29 = scmp.eq.s32.totalorder %s17, 2
    %p30 = por %p28, %p29
    %p31 = scmp.ne.s32.totalorder %s22, %s23
    %p32 = scmp.eq.s32.totalorder %s17, 0
    %p33 = por %p31, %p32
    %p34 = scmp.ne.s32.totalorder %s22, %s23
    %p35 = scmp.eq.s32.totalorder %s18, 2
    %p36 = por %p34, %p35
    %p38 = scmp.ne.s32.totalorder %s23, %s37
    %p39 = scmp.eq.s32.totalorder %s18, 0
    %p40 = por %p38, %p39
    %s41 = ssub.s32 %s12, %s19
    %p42 = scmp.eq.s32.totalorder %s41, 0
    %s44 = sadd.s32 %s43, 1
    %s45 = scalar_select %p42, %s43, %s44
    %p48 = pneg %p42
    %p49 = scmp.eq.s32.totalorder %s12, 2
    %p50 = por %p48, %p49
    %p51 = scmp.ne.s32.totalorder %s43, %s46
    %p52 = scmp.eq.s32.totalorder %s12, 0
    %p53 = por %p51, %p52
    %p54 = scmp.ne.s32.totalorder %s43, %s46
    %p55 = scmp.eq.s32.totalorder %s17, 2
    %p56 = por %p54, %p55
    %p57 = scmp.ne.s32.totalorder %s46, %s47
    %p58 = scmp.eq.s32.totalorder %s17, 0
    %p59 = por %p57, %p58
    %p60 = scmp.ne.s32.totalorder %s46, %s47
    %p61 = scmp.eq.s32.totalorder %s18, 2
    %p62 = por %p60, %p61
    %p64 = scmp.ne.s32.totalorder %s47, %s63
    %p65 = scmp.eq.s32.totalorder %s18, 0
    %p66 = por %p64, %p65
    %s67 = ssub.s32 %s12, %s19
    %p68 = scmp.eq.s32.totalorder %s67, 0
    %s70 = sadd.s32 %s69, 1
    %s71 = scalar_select %p68, %s69, %s70
    %p74 = pneg %p68
    %p75 = scmp.eq.s32.totalorder %s12, 2
    %p76 = por %p74, %p75
    %p77 = scmp.ne.s32.totalorder %s69, %s72
    %p78 = scmp.eq.s32.totalorder %s12, 0
    %p79 = por %p77, %p78
    %p80 = scmp.ne.s32.totalorder %s69, %s72
    %p81 = scmp.eq.s32.totalorder %s17, 2
    %p82 = por %p80, %p81
    %p83 = scmp.ne.s32.totalorder %s72, %s73
    %p84 = scmp.eq.s32.totalorder %s17, 0
    %p85 = por %p83, %p84
    %p86 = scmp.ne.s32.totalorder %s72, %s73
    %p87 = scmp.eq.s32.totalorder %s18, 2
    %p88 = por %p86, %p87
    %p90 = scmp.ne.s32.totalorder %s73, %s89
    %p91 = scmp.eq.s32.totalorder %s18, 0
    %p92 = por %p90, %p91
    %s94 = sadd.s32 %s93, 1
    %p97 = scmp.eq.s32.totalorder %s12, 2
    %p98 = scmp.ne.s32.totalorder %s93, %s95
    %p99 = scmp.eq.s32.totalorder %s12, 0
    %p100 = por %p98, %p99
    %p101 = scmp.ne.s32.totalorder %s93, %s95
    %p102 = scmp.eq.s32.totalorder %s17, 2
    %p103 = por %p101, %p102
    %p104 = scmp.ne.s32.totalorder %s95, %s96
    %p105 = scmp.eq.s32.totalorder %s17, 0
    %p106 = por %p104, %p105
    %p107 = scmp.ne.s32.totalorder %s95, %s96
    %p108 = scmp.eq.s32.totalorder %s18, 2
    %p109 = por %p107, %p108
    %p111 = scmp.ne.s32.totalorder %s96, %s110
    %p112 = scmp.eq.s32.totalorder %s18, 0
    %p113 = por %p111, %p112
    %s115 = sadd.s32 %s114, 1
    %p118 = scmp.eq.s32.totalorder %s12, 2
    %p119 = scmp.ne.s32.totalorder %s114, %s116
    %p120 = scmp.eq.s32.totalorder %s12, 0
    %p121 = por %p119, %p120
    %p122 = scmp.ne.s32.totalorder %s114, %s116
    %p123 = scmp.eq.s32.totalorder %s17, 2
    %p124 = por %p122, %p123
    %p125 = scmp.ne.s32.totalorder %s116, %s117
    %p126 = scmp.eq.s32.totalorder %s17, 0
    %p127 = por %p125, %p126
    %p128 = scmp.ne.s32.totalorder %s116, %s117
    %p129 = scmp.eq.s32.totalorder %s18, 2
    %p130 = por %p128, %p129
    %p132 = scmp.ne.s32.totalorder %s117, %s131
    %p133 = scmp.eq.s32.totalorder %s18, 0
    %p134 = por %p132, %p133
    %s136 = sadd.s32 %s135, 1
    %p139 = scmp.eq.s32.totalorder %s12, 2
    %p140 = scmp.ne.s32.totalorder %s135, %s137
    %p141 = scmp.eq.s32.totalorder %s12, 0
    %p142 = por %p140, %p141
    %p143 = scmp.ne.s32.totalorder %s135, %s137
    %p144 = scmp.eq.s32.totalorder %s17, 2
    %p145 = por %p143, %p144
    %p146 = scmp.ne.s32.totalorder %s137, %s138
    %p147 = scmp.eq.s32.totalorder %s17, 0
    %p148 = por %p146, %p147
    %p149 = scmp.ne.s32.totalorder %s137, %s138
    %p150 = scmp.eq.s32.totalorder %s18, 2
    %p151 = por %p149, %p150
    %p153 = scmp.ne.s32.totalorder %s138, %s152
    %p154 = scmp.eq.s32.totalorder %s18, 0
    %p155 = por %p153, %p154
    %s156 = ssub.s32 %s12, %s19
    %p157 = scmp.eq.s32.totalorder %s156, 0
    %s159 = sadd.s32 %s158, 1
    %s160 = scalar_select %p157, %s158, %s159
    %p163 = pneg %p157
    %p164 = scmp.eq.s32.totalorder %s12, 2
    %p165 = por %p163, %p164
    %p166 = scmp.ne.s32.totalorder %s158, %s161
    %p167 = scmp.eq.s32.totalorder %s12, 0
    %p168 = por %p166, %p167
    %p169 = scmp.ne.s32.totalorder %s158, %s161
    %p170 = scmp.eq.s32.totalorder %s17, 2
    %p171 = por %p169, %p170
    %p172 = scmp.ne.s32.totalorder %s161, %s162
    %p173 = scmp.eq.s32.totalorder %s17, 0
    %p174 = por %p172, %p173
    %p175 = scmp.ne.s32.totalorder %s161, %s162
    %p176 = scmp.eq.s32.totalorder %s18, 2
    %p177 = por %p175, %p176
    %p179 = scmp.ne.s32.totalorder %s162, %s178
    %p180 = scmp.eq.s32.totalorder %s18, 0
    %p181 = por %p179, %p180
    %p182 = scmp.le.s32.totalorder 1, %s12
    %p183 = scmp.lt.s32.totalorder %s12, 4
    %p184 = pnand %p182, %p183
    %p185 = pneg %p184
    // Predicated region
    $region9: #{chebnet_edge_forward.5} parent=5 // pred_check
      _
    $region10: #{chebnet_edge_forward.5} parent=5 // pred_check_branch
      %187 = sbr.rel (%p184) target = $region12
    $region11: #{chebnet_edge_forward.5} parent=5 // pred_region
      %s188 = ssub.s32 %s12, 1
      // Predicated region
      $region13: #{chebnet_edge_forward.5} parent=11 // pred_check
        %p189 = pneg %p33
      $region14: #{chebnet_edge_forward.5} parent=11 // pred_check_branch
        %191 = sbr.rel (%p189) target = $region16
      $region15: #{chebnet_edge_forward.5} parent=11 // pred_region
        _
      $region16: #{chebnet_edge_forward.5} parent=11 // pred_fallthru
        _
      // Predicated region
      $region17: #{chebnet_edge_forward.5} parent=11 // pred_check
        %p192 = pneg %p106
      $region18: #{chebnet_edge_forward.5} parent=11 // pred_check_branch
        %194 = sbr.rel (%p192) target = $region20
      $region19: #{chebnet_edge_forward.5} parent=11 // pred_region
        _
      $region20: #{chebnet_edge_forward.5} parent=11 // pred_fallthru
        _
      // Predicated region
      $region21: #{chebnet_edge_forward.5} parent=11 // pred_check
        %p195 = pneg %p127
      $region22: #{chebnet_edge_forward.5} parent=11 // pred_check_branch
        %197 = sbr.rel (%p195) target = $region24
      $region23: #{chebnet_edge_forward.5} parent=11 // pred_region
        _
      $region24: #{chebnet_edge_forward.5} parent=11 // pred_fallthru
        _
      // Predicated region
      $region25: #{chebnet_edge_forward.5} parent=11 // pred_check
        %p198 = pneg %p148
      $region26: #{chebnet_edge_forward.5} parent=11 // pred_check_branch
        %200 = sbr.rel (%p198) target = $region28
      $region27: #{chebnet_edge_forward.5} parent=11 // pred_region
        _
      $region28: #{chebnet_edge_forward.5} parent=11 // pred_fallthru
        _
    $region12: #{chebnet_edge_forward.5} parent=5 // pred_fallthru
      _
    %p201 = scmp.lt.s32.totalorder %s12, 3
    // Predicated region
    $region29: #{chebnet_edge_forward.5} parent=5 // pred_check
      %p202 = pneg %p201
    $region30: #{chebnet_edge_forward.5} parent=5 // pred_check_branch
      %204 = sbr.rel (%p202) target = $region32
    $region31: #{chebnet_edge_forward.5} parent=5 // pred_region
      // Predicated region
      $region33: #{chebnet_edge_forward.5} parent=31 // pred_check
        %p205 = pneg %p53
      $region34: #{chebnet_edge_forward.5} parent=31 // pred_check_branch
        %207 = sbr.rel (%p205) target = $region36
      $region35: #{chebnet_edge_forward.5} parent=31 // pred_region
        %s208 = smul.u32 4, %s12
        %p209 = scmp.lt.s32.totalorder %s208, 11
        %s210 = scalar_select %p209, %s208, 11
        %s211 = smul.addr %s210, 8
        %s212 = scalar_lea.vmem %s1, %s211
        %s213 = smul.u32 4, %s12
      $region36: #{chebnet_edge_forward.5} parent=31 // pred_fallthru
        _
      // Predicated region
      $region37: #{chebnet_edge_forward.5} parent=31 // pred_check
        %p214 = pneg %p79
      $region38: #{chebnet_edge_forward.5} parent=31 // pred_check_branch
        %216 = sbr.rel (%p214) target = $region40
      $region39: #{chebnet_edge_forward.5} parent=31 // pred_region
        %s217 = smul.u32 4, %s12
        %p218 = scmp.lt.s32.totalorder %s217, 11
        %s219 = scalar_select %p218, %s217, 11
        %s220 = smul.addr %s219, 8
        %s221 = scalar_lea.vmem %s2, %s220
        %s222 = smul.u32 4, %s12
      $region40: #{chebnet_edge_forward.5} parent=31 // pred_fallthru
        _
    $region32: #{chebnet_edge_forward.5} parent=5 // pred_fallthru
      _
    %p223 = scmp.le.s32.totalorder 1, %s12
    %p224 = scmp.lt.s32.totalorder %s12, 4
    %p225 = pnand %p223, %p224
    %p226 = pneg %p225
    // Predicated region
    $region41: #{chebnet_edge_forward.5} parent=5 // pred_check
      _
    $region42: #{chebnet_edge_forward.5} parent=5 // pred_check_branch
      %228 = sbr.rel (%p225) target = $region44
    $region43: #{chebnet_edge_forward.5} parent=5 // pred_region
      %s229 = ssub.s32 %s12, 1
      %p230 = pneg %p33
      %p231 = pneg %p30
      %s232 = smul.u32 4, %s17
      %p233 = scmp.lt.s32.totalorder %s232, 11
      %s234 = scalar_select %p233, %s232, 11
      %s235 = smul.addr %s234, 8
      %s236 = scalar_lea.vmem %s1, %s235
      %p237 = pneg %p59
      %p238 = pneg %p56
      %s239 = smul.u32 4, %s17
      %p240 = scmp.lt.s32.totalorder %s239, 11
      %s241 = scalar_select %p240, %s239, 11
      %s242 = smul.addr %s241, 8
      %s243 = scalar_lea.vmem %s2, %s242
      %p244 = pneg %p85
      %p245 = pneg %p82
      %p246 = pneg %p106
      %p247 = pneg %p103
      %p248 = pneg %p127
      %p249 = pneg %p124
      %p250 = pneg %p148
      %p251 = pneg %p145
      %p252 = pneg %p174
      %p253 = pneg %p171
      %s254 = smul.u32 4, %s17
      %p255 = scmp.lt.s32.totalorder %s254, 11
      %s256 = scalar_select %p255, %s254, 11
      %s257 = smul.addr %s256, 8
      %s258 = scalar_lea.vmem %s6, %s257
      %s259 = smul.u32 4, %s17
      %p260 = scmp.lt.s32.totalorder %s259, 11
      %s261 = scalar_select %p260, %s259, 11
      %s262 = smul.addr %s261, 8
      %s263 = scalar_lea.vmem %s1, %s262
      %s264 = smul.u32 4, %s17
      %s265 = smul.u32 4, %s17
      %p266 = scmp.lt.s32.totalorder %s265, 11
      %s267 = scalar_select %p266, %s265, 11
      %s268 = smul.addr %s267, 8
      %s269 = scalar_lea.vmem %s2, %s268
      %s270 = smul.u32 4, %s17
      %s271 = smul.u32 4, %s17
      %p272 = scmp.lt.s32.totalorder %s271, 11
      %s273 = scalar_select %p272, %s271, 11
      %s274 = smul.addr %s273, 8
      %s275 = scalar_lea.vmem %s6, %s274
      %s276 = smul.u32 4, %s17
      %v277 = vld [vmem:[%s0] sm:$0xff]
      %v278 = vld [vmem:[%s0 + $0x8] sm:$0xff]
      %v279 = vld [vmem:[%s0 + $0x10] sm:$0xff]
      %v280 = vld [vmem:[%s0 + $0x18] sm:$0xff]
      %v281 = vld [vmem:[%s0 + $0x20] sm:$0xff]
      %v282 = vld [vmem:[%s0 + $0x28] sm:$0xff]
      %v283 = vld [vmem:[%s0 + $0x30] sm:$0xff]
      %v284 = vld [vmem:[%s0 + $0x38] sm:$0xff]
      %v285 = vld [vmem:[%s0 + $0x40] sm:$0xff]
      %v286 = vld [vmem:[%s0 + $0x48] sm:$0xff]
      %v287 = vld [vmem:[%s0 + $0x50] sm:$0xff]
      %v288 = vld [vmem:[%s0 + $0x58] sm:$0xff]
      %v289 = vld [vmem:[%s0 + $0x60] sm:$0xff]
      %v290 = vld [vmem:[%s0 + $0x68] sm:$0xff]
      %v291 = vld [vmem:[%s0 + $0x70] sm:$0xff]
      %v292 = vld [vmem:[%s0 + $0x78] sm:$0xff]
      %v293 = vld [vmem:[%s3] sm:$0xff]
      %vm294 = vcmask 64512
      %v296 = vsel %vm294, %v277, 0
      %v299 = vsel %vm294, %v278, 0
      %v302 = vsel %vm294, %v279, 0
      %v305 = vsel %vm294, %v280, 0
      %v308 = vsel %vm294, %v281, 0
      %v311 = vsel %vm294, %v282, 0
      %v314 = vsel %vm294, %v283, 0
      %v317 = vsel %vm294, %v284, 0
      %v320 = vsel %vm294, %v285, 0
      %v323 = vsel %vm294, %v286, 0
      %v326 = vsel %vm294, %v287, 0
      %v329 = vsel %vm294, %v288, 0
      %v332 = vsel %vm294, %v289, 0
      %v335 = vsel %vm294, %v290, 0
      %v338 = vsel %vm294, %v291, 0
      %v341 = vsel %vm294, %v292, 0
      %343 = vmatpush.msra.mxu0 0.0
      %344 = vmatpush.msra.mxu0 0.0
      %345 = vmatpush.msra.mxu0 0.0
      %346 = vmatpush.msra.mxu0 0.0
      %347 = vmatpush.msra.mxu0 0.0
      %348 = vmatpush.msra.mxu0 0.0
      %349 = vmatpush.msra.mxu0 0.0
      %350 = vmatpush.msra.mxu0 0.0
      %351 = vmatpush.msra.mxu0 0.0
      %352 = vmatpush.msra.mxu0 0.0
      %353 = vmatpush.msra.mxu0 0.0
      %354 = vmatpush.msra.mxu0 0.0
      %355 = vmatpush.msra.mxu0 0.0
      %356 = vmatpush.msra.mxu0 0.0
      %357 = vmatpush.msra.mxu0 0.0
      %358 = vmatpush.msra.mxu0 %v293
      %359 = vmatmul.f32.gmra.mxu0 %v296
      %v360 = vpop.f32.mrf.mxu0
      %v361 = vadd.f32 0.0, %v360
      %362 = vmatmul.f32.gmra.mxu0 %v299
      %v363 = vpop.f32.mrf.mxu0
      %v364 = vadd.f32 0.0, %v363
      %365 = vmatmul.f32.gmra.mxu0 %v302
      %v366 = vpop.f32.mrf.mxu0
      %v367 = vadd.f32 0.0, %v366
      %368 = vmatmul.f32.gmra.mxu0 %v305
      %v369 = vpop.f32.mrf.mxu0
      %v370 = vadd.f32 0.0, %v369
      %371 = vmatmul.f32.gmra.mxu0 %v308
      %v372 = vpop.f32.mrf.mxu0
      %v373 = vadd.f32 0.0, %v372
      %374 = vmatmul.f32.gmra.mxu0 %v311
      %v375 = vpop.f32.mrf.mxu0
      %v376 = vadd.f32 0.0, %v375
      %377 = vmatmul.f32.gmra.mxu0 %v314
      %v378 = vpop.f32.mrf.mxu0
      %v379 = vadd.f32 0.0, %v378
      %380 = vmatmul.f32.gmra.mxu0 %v317
      %v381 = vpop.f32.mrf.mxu0
      %v382 = vadd.f32 0.0, %v381
      %383 = vmatmul.f32.gmra.mxu0 %v320
      %v384 = vpop.f32.mrf.mxu0
      %v385 = vadd.f32 0.0, %v384
      %386 = vmatmul.f32.gmra.mxu0 %v323
      %v387 = vpop.f32.mrf.mxu0
      %v388 = vadd.f32 0.0, %v387
      %389 = vmatmul.f32.gmra.mxu0 %v326
      %v390 = vpop.f32.mrf.mxu0
      %v391 = vadd.f32 0.0, %v390
      %392 = vmatmul.f32.gmra.mxu0 %v329
      %v393 = vpop.f32.mrf.mxu0
      %v394 = vadd.f32 0.0, %v393
      %395 = vmatmul.f32.gmra.mxu0 %v332
      %v396 = vpop.f32.mrf.mxu0
      %v397 = vadd.f32 0.0, %v396
      %398 = vmatmul.f32.gmra.mxu0 %v335
      %v399 = vpop.f32.mrf.mxu0
      %v400 = vadd.f32 0.0, %v399
      %401 = vmatmul.f32.gmra.mxu0 %v338
      %v402 = vpop.f32.mrf.mxu0
      %v403 = vadd.f32 0.0, %v402
      %404 = vmatmul.f32.gmra.mxu0 %v341
      %v405 = vpop.f32.mrf.mxu0
      %v406 = vadd.f32 0.0, %v405
      %407 = vdwg.mxu0
      %v408 = vld [vmem:[%s4] sm:$0xff]
      %409 = vmatpush.msra.mxu0 0.0
      %410 = vmatpush.msra.mxu0 0.0
      %411 = vmatpush.msra.mxu0 0.0
      %412 = vmatpush.msra.mxu0 0.0
      %413 = vmatpush.msra.mxu0 0.0
      %414 = vmatpush.msra.mxu0 0.0
      %415 = vmatpush.msra.mxu0 0.0
      %416 = vmatpush.msra.mxu0 0.0
      %417 = vmatpush.msra.mxu0 0.0
      %418 = vmatpush.msra.mxu0 0.0
      %419 = vmatpush.msra.mxu0 0.0
      %420 = vmatpush.msra.mxu0 0.0
      %421 = vmatpush.msra.mxu0 0.0
      %422 = vmatpush.msra.mxu0 0.0
      %423 = vmatpush.msra.mxu0 0.0
      %424 = vmatpush.msra.mxu0 %v408
      %425 = vmatmul.f32.gmra.mxu0 %v296
      %v426 = vpop.f32.mrf.mxu0
      %v427 = vadd.f32 0.0, %v426
      %428 = vmatmul.f32.gmra.mxu0 %v299
      %v429 = vpop.f32.mrf.mxu0
      %v430 = vadd.f32 0.0, %v429
      %431 = vmatmul.f32.gmra.mxu0 %v302
      %v432 = vpop.f32.mrf.mxu0
      %v433 = vadd.f32 0.0, %v432
      %434 = vmatmul.f32.gmra.mxu0 %v305
      %v435 = vpop.f32.mrf.mxu0
      %v436 = vadd.f32 0.0, %v435
      %437 = vmatmul.f32.gmra.mxu0 %v308
      %v438 = vpop.f32.mrf.mxu0
      %v439 = vadd.f32 0.0, %v438
      %440 = vmatmul.f32.gmra.mxu0 %v311
      %v441 = vpop.f32.mrf.mxu0
      %v442 = vadd.f32 0.0, %v441
      %443 = vmatmul.f32.gmra.mxu0 %v314
      %v444 = vpop.f32.mrf.mxu0
      %v445 = vadd.f32 0.0, %v444
      %446 = vmatmul.f32.gmra.mxu0 %v317
      %v447 = vpop.f32.mrf.mxu0
      %v448 = vadd.f32 0.0, %v447
      %449 = vmatmul.f32.gmra.mxu0 %v320
      %v450 = vpop.f32.mrf.mxu0
      %v451 = vadd.f32 0.0, %v450
      %452 = vmatmul.f32.gmra.mxu0 %v323
      %v453 = vpop.f32.mrf.mxu0
      %v454 = vadd.f32 0.0, %v453
      %455 = vmatmul.f32.gmra.mxu0 %v326
      %v456 = vpop.f32.mrf.mxu0
      %v457 = vadd.f32 0.0, %v456
      %458 = vmatmul.f32.gmra.mxu0 %v329
      %v459 = vpop.f32.mrf.mxu0
      %v460 = vadd.f32 0.0, %v459
      %461 = vmatmul.f32.gmra.mxu0 %v332
      %v462 = vpop.f32.mrf.mxu0
      %v463 = vadd.f32 0.0, %v462
      %464 = vmatmul.f32.gmra.mxu0 %v335
      %v465 = vpop.f32.mrf.mxu0
      %v466 = vadd.f32 0.0, %v465
      %467 = vmatmul.f32.gmra.mxu0 %v338
      %v468 = vpop.f32.mrf.mxu0
      %v469 = vadd.f32 0.0, %v468
      %470 = vmatmul.f32.gmra.mxu0 %v341
      %v471 = vpop.f32.mrf.mxu0
      %v472 = vadd.f32 0.0, %v471
      %473 = vdwg.mxu0
      %v474 = vlaneseq
      %v475 = vand.u32 %v474, 127
      %v476 = vld [vmem:[%s263] sm:$0xff]
      %v477 = vld [vmem:[%s263 + $0x8] sm:$0xff]
      %v478 = vld [vmem:[%s263 + $0x10] sm:$0xff]
      %v479 = vld [vmem:[%s263 + $0x18] sm:$0xff]
      %480 = vset.pattern.permute.xlu0 0
      %481 = vperm.xlu0 %480, %v476
      %v482 = vpop.permute.xlu0 %481
      %483 = vset.pattern.permute.xlu0 0
      %484 = vperm.xlu0 %483, %v477
      %v485 = vpop.permute.xlu0 %484
      %486 = vset.pattern.permute.xlu0 0
      %487 = vperm.xlu0 %486, %v478
      %v488 = vpop.permute.xlu0 %487
      %489 = vset.pattern.permute.xlu0 0
      %490 = vperm.xlu0 %489, %v479
      %v491 = vpop.permute.xlu0 %490
      %vm492 = vcmp.eq.s32.totalorder %v475, %v482
      %vm493 = vcmp.eq.s32.totalorder %v475, %v485
      %vm494 = vcmp.eq.s32.totalorder %v475, %v488
      %vm495 = vcmp.eq.s32.totalorder %v475, %v491
      %v496 = vsel %vm492, 1, 0
      %v497 = vsel %vm493, 1, 0
      %v498 = vsel %vm494, 1, 0
      %v499 = vsel %vm495, 1, 0
      %v500 = vcvt.s32.f32 %v496
      %v501 = vcvt.s32.f32 %v497
      %v502 = vcvt.s32.f32 %v498
      %v503 = vcvt.s32.f32 %v499
      %v504 = vld [vmem:[%s269] sm:$0xff]
      %v505 = vld [vmem:[%s269 + $0x8] sm:$0xff]
      %v506 = vld [vmem:[%s269 + $0x10] sm:$0xff]
      %v507 = vld [vmem:[%s269 + $0x18] sm:$0xff]
      %508 = vset.pattern.permute.xlu0 0
      %509 = vperm.xlu0 %508, %v504
      %v510 = vpop.permute.xlu0 %509
      %511 = vset.pattern.permute.xlu0 0
      %512 = vperm.xlu0 %511, %v505
      %v513 = vpop.permute.xlu0 %512
      %514 = vset.pattern.permute.xlu0 0
      %515 = vperm.xlu0 %514, %v506
      %v516 = vpop.permute.xlu0 %515
      %517 = vset.pattern.permute.xlu0 0
      %518 = vperm.xlu0 %517, %v507
      %v519 = vpop.permute.xlu0 %518
      %vm520 = vcmp.eq.s32.totalorder %v475, %v510
      %vm521 = vcmp.eq.s32.totalorder %v475, %v513
      %vm522 = vcmp.eq.s32.totalorder %v475, %v516
      %vm523 = vcmp.eq.s32.totalorder %v475, %v519
      %v524 = vsel %vm520, 1, 0
      %v525 = vsel %vm521, 1, 0
      %v526 = vsel %vm522, 1, 0
      %v527 = vsel %vm523, 1, 0
      %v528 = vcvt.s32.f32 %v524
      %v529 = vcvt.s32.f32 %v525
      %v530 = vcvt.s32.f32 %v526
      %v531 = vcvt.s32.f32 %v527
      %532 = vmatpush.msra.mxu0 %v472
      %533 = vmatpush.msra.mxu0 %v469
      %534 = vmatpush.msra.mxu0 %v466
      %535 = vmatpush.msra.mxu0 %v463
      %536 = vmatpush.msra.mxu0 %v460
      %537 = vmatpush.msra.mxu0 %v457
      %538 = vmatpush.msra.mxu0 %v454
      %539 = vmatpush.msra.mxu0 %v451
      %540 = vmatpush.msra.mxu0 %v448
      %541 = vmatpush.msra.mxu0 %v445
      %542 = vmatpush.msra.mxu0 %v442
      %543 = vmatpush.msra.mxu0 %v439
      %544 = vmatpush.msra.mxu0 %v436
      %545 = vmatpush.msra.mxu0 %v433
      %546 = vmatpush.msra.mxu0 %v430
      %547 = vmatpush.msra.mxu0 %v427
      %548 = vmatmul.f32.gmra.mxu0 %v528
      %v549 = vpop.f32.mrf.mxu0
      %v550 = vadd.f32 0.0, %v549
      %551 = vmatmul.f32.gmra.mxu0 %v529
      %v552 = vpop.f32.mrf.mxu0
      %v553 = vadd.f32 0.0, %v552
      %554 = vmatmul.f32.gmra.mxu0 %v530
      %v555 = vpop.f32.mrf.mxu0
      %v556 = vadd.f32 0.0, %v555
      %557 = vmatmul.f32.gmra.mxu0 %v531
      %v558 = vpop.f32.mrf.mxu0
      %v559 = vadd.f32 0.0, %v558
      %560 = vdwg.mxu0
      %561 = vmatpush.msra.mxu0 %v406
      %562 = vmatpush.msra.mxu0 %v403
      %563 = vmatpush.msra.mxu0 %v400
      %564 = vmatpush.msra.mxu0 %v397
      %565 = vmatpush.msra.mxu0 %v394
      %566 = vmatpush.msra.mxu0 %v391
      %567 = vmatpush.msra.mxu0 %v388
      %568 = vmatpush.msra.mxu0 %v385
      %569 = vmatpush.msra.mxu0 %v382
      %570 = vmatpush.msra.mxu0 %v379
      %571 = vmatpush.msra.mxu0 %v376
      %572 = vmatpush.msra.mxu0 %v373
      %573 = vmatpush.msra.mxu0 %v370
      %574 = vmatpush.msra.mxu0 %v367
      %575 = vmatpush.msra.mxu0 %v364
      %576 = vmatpush.msra.mxu0 %v361
      %577 = vmatmul.f32.gmra.mxu0 %v500
      %v578 = vpop.f32.mrf.mxu0
      %v579 = vadd.f32 %v550, %v578
      %580 = vmatmul.f32.gmra.mxu0 %v501
      %v581 = vpop.f32.mrf.mxu0
      %v582 = vadd.f32 %v553, %v581
      %583 = vmatmul.f32.gmra.mxu0 %v502
      %v584 = vpop.f32.mrf.mxu0
      %v585 = vadd.f32 %v556, %v584
      %586 = vmatmul.f32.gmra.mxu0 %v503
      %v587 = vpop.f32.mrf.mxu0
      %v588 = vadd.f32 %v559, %v587
      %589 = vdwg.mxu0
      %v590 = vld [vmem:[%s5] sm:$0x1]
      %v592 = vperm.slane %v590, 0
      %v594 = vadd.f32 %v579, %v592
      %v595 = vadd.f32 %v582, %v592
      %v596 = vadd.f32 %v585, %v592
      %v597 = vadd.f32 %v588, %v592
      %vm598 = vcmask 15360
      %v599 = vsel %vm598, %v594, -inf
      %600 = vmax.xlane.f32.xlu0 %v599
      %v601 = vpop.xlane.xlu0 %600
      %v602 = vsel %vm598, %v595, -inf
      %603 = vmax.xlane.f32.xlu0 %v602
      %v604 = vpop.xlane.xlu0 %603
      %v605 = vsel %vm598, %v596, -inf
      %606 = vmax.xlane.f32.xlu0 %v605
      %v607 = vpop.xlane.xlu0 %606
      %v608 = vsel %vm598, %v597, -inf
      %609 = vmax.xlane.f32.xlu0 %v608
      %v610 = vpop.xlane.xlu0 %609
      %v611 = vsub.f32 %v594, %v601
      %v612 = vsub.f32 %v595, %v604
      %v613 = vsub.f32 %v596, %v607
      %v614 = vsub.f32 %v597, %v610
      %v615 = vmul.f32 %v611, 1.442695
      %v616 = vpow.pop %v615
      %v617 = vmul.f32 %v612, 1.442695
      %v618 = vpow.pop %v617
      %v619 = vmul.f32 %v613, 1.442695
      %v620 = vpow.pop %v619
      %v621 = vmul.f32 %v614, 1.442695
      %v622 = vpow.pop %v621
      %v623 = vsel %vm598, %v616, 0.0
      %624 = vadd.xlane.f32.xlu0 %v623
      %v625 = vpop.xlane.xlu0 %624
      %v626 = vsel %vm598, %v618, 0.0
      %627 = vadd.xlane.f32.xlu0 %v626
      %v628 = vpop.xlane.xlu0 %627
      %v629 = vsel %vm598, %v620, 0.0
      %630 = vadd.xlane.f32.xlu0 %v629
      %v631 = vpop.xlane.xlu0 %630
      %v632 = vsel %vm598, %v622, 0.0
      %633 = vadd.xlane.f32.xlu0 %v632
      %v634 = vpop.xlane.xlu0 %633
      %v635 = vlog2.pop %v625
      %v636 = vmul.f32 %v635, 0.6931472
      %v637 = vlog2.pop %v628
      %v638 = vmul.f32 %v637, 0.6931472
      %v639 = vlog2.pop %v631
      %v640 = vmul.f32 %v639, 0.6931472
      %v641 = vlog2.pop %v634
      %v642 = vmul.f32 %v641, 0.6931472
      %v643 = vsub.f32 %v611, %v636
      %v644 = vsub.f32 %v612, %v638
      %v645 = vsub.f32 %v613, %v640
      %v646 = vsub.f32 %v614, %v642
      %647 = vst.msk [vmem:[%s275] sm:$0xff] %vm598, %v643
      %648 = vst.msk [vmem:[%s275 + $0x8] sm:$0xff] %vm598, %v644
      %649 = vst.msk [vmem:[%s275 + $0x10] sm:$0xff] %vm598, %v645
      %650 = vst.msk [vmem:[%s275 + $0x18] sm:$0xff] %vm598, %v646
      %s651 = smul.u32 4, %s17
      %p652 = scmp.lt.s32.totalorder %s651, 11
      %s653 = scalar_select %p652, %s651, 11
      %s654 = smul.addr %s653, 8
      %s655 = scalar_lea.vmem %s6, %s654
      // Predicated region
      $region45: #{chebnet_edge_forward.5} parent=43 // pred_check
        %p656 = pneg %p171
      $region46: #{chebnet_edge_forward.5} parent=43 // pred_check_branch
        %658 = sbr.rel (%p656) target = $region48
      $region47: #{chebnet_edge_forward.5} parent=43 // pred_region
        %s659 = smul.u32 4, %s17
      $region48: #{chebnet_edge_forward.5} parent=43 // pred_fallthru
        _
    $region44: #{chebnet_edge_forward.5} parent=5 // pred_fallthru
      _
    %p660 = scmp.le.s32.totalorder 2, %s12
    // Predicated region
    $region49: #{chebnet_edge_forward.5} parent=5 // pred_check
      %p661 = pneg %p660
    $region50: #{chebnet_edge_forward.5} parent=5 // pred_check_branch
      %663 = sbr.rel (%p661) target = $region52
    $region51: #{chebnet_edge_forward.5} parent=5 // pred_region
      %s664 = ssub.s32 %s12, 2
      // Predicated region
      $region53: #{chebnet_edge_forward.5} parent=51 // pred_check
        %p665 = pneg %p177
      $region54: #{chebnet_edge_forward.5} parent=51 // pred_check_branch
        %667 = sbr.rel (%p665) target = $region56
      $region55: #{chebnet_edge_forward.5} parent=51 // pred_region
        %s668 = smul.u32 4, %s18
        %p669 = scmp.lt.s32.totalorder %s668, 11
        %s670 = scalar_select %p669, %s668, 11
        %s671 = smul.addr %s670, 8
        %s672 = scalar_lea.vmem %s6, %s671
      $region56: #{chebnet_edge_forward.5} parent=51 // pred_fallthru
        _
    $region52: #{chebnet_edge_forward.5} parent=5 // pred_fallthru
      _
  $region6: #{chebnet_edge_forward.5} parent=0 // loop_footer
    %s16 = sadd.s32 1, %s12
  $region7: #{chebnet_edge_forward.5} parent=0 // loop_footer_branch
    %11 = sbr.rel target = $region3
  $region8: #{chebnet_edge_forward.5} parent=0 // loop_exit
    _

</llo_original>
